<compile_context>
chip_gen: v6e
topology: v6e:2x2x1
jax: 0.10.0
libtpu: 0.0.40
codegen_flags: <defaults>
</compile_context>

<pallas_src>
import jax
import jax.numpy as jnp
from jax.experimental import pallas as pl
from jax.experimental.pallas import tpu as pltpu


def _make_kernel(n_m, time_block, batch):
    def kernel(a_w_ref, a_s_ref, g_ref, e_T_ref, x0_ref,
               m_ref, dt_ref, d_ref,
               X_ref,
               x_state, a_effT):
        c = pl.program_id(0)

        # ---- one-time prologue: effective A (stored transposed) + x init ----
        @pl.when(c == 0)
        def _():
            w = a_w_ref[...]
            w = w - jnp.max(w, axis=1, keepdims=True)
            ew = jnp.exp(w)
            sm = ew / jnp.sum(ew, axis=1, keepdims=True)         # softmax(dim=1)
            s_cl = 1.0 - 0.1 * jax.nn.sigmoid(a_s_ref[...])
            a_effT[...] = (s_cl * sm).T          # pre-transpose once, not per step
            x_state[...] = x0_ref[...]

        # ---- parallel part: drive V for all TB steps of this chunk ----------
        m = m_ref[...]                            # (TB*batch, n_m)
        dt = dt_ref[...]                          # (TB*batch, n_dT)
        v = jnp.dot(d_ref[...], e_T_ref[...],     # D @ E^T
                    preferred_element_type=jnp.float32)
        for i in range(n_m):                      # static tiny loop: Bilinear∘B
            v = v + jnp.dot(m[:, i:i + 1] * dt, g_ref[i],
                            preferred_element_type=jnp.float32)
        X_ref[...] = v                            # stage drive into output block

        # ---- serial part: recurrence over the TB steps of this chunk --------
        A_T = a_effT[...]                         # hoisted out of the loop

        def step(s, x):
            r0 = pl.multiple_of(s * batch, batch)
            rows = pl.ds(r0, batch)
            x_new = (jnp.dot(x, A_T, preferred_element_type=jnp.float32)
                     + X_ref[rows, :])            # += staged drive V[t]
            X_ref[rows, :] = x_new
            return x_new

        x_fin = jax.lax.fori_loop(0, time_block, step, x_state[...],
                                  unroll=time_block <= 16)
        x_state[...] = x_fin

    return kernel


def ssm_gray_forward(params, x, M_flow, DT, D, time_block=None):
    """Pallas forward pass. Returns (X, Y) = ((T,batch,nx), (T,batch))."""
    a_w, a_s, b_w, e_w, hf_w = params
    T, batch, n_m = M_flow.shape
    n_dT = DT.shape[-1]
    nd = D.shape[-1]
    nx = x.shape[-1]

    # One chunk covers the whole sequence at demo sizes.  For production-size
    # T/batch, pick time_block so the resident chunk blocks fit VMEM (budget
    # against 64 MiB on v7x, i.e. roughly half the v5e/v6e chunk length).
    if time_block is None:
        time_block = T
    assert T % time_block == 0
    num_chunks = T // time_block
    rows = time_block * batch

    # Parameter-only folding (glue, done once outside the kernel):
    #   G[i,j,:] = sum_k B[:,k] * W_hf[k,i,j]   so that
    #   (u @ B^T) = sum_i (M[:, i:i+1] * DT) @ G[i]
    G = jnp.einsum('nk,kij->ijn', b_w, hf_w)      # (n_m, n_dT, nx)
    e_T = e_w.T                                   # (nd, nx)

    # Collapse (T, batch) -> rows so every block is a plain 2-D tile.
    M2 = M_flow.reshape(T * batch, n_m)
    DT2 = DT.reshape(T * batch, n_dT)
    D2 = D.reshape(T * batch, nd)

    kernel = _make_kernel(n_m, time_block, batch)

    X2 = pl.pallas_call(
        kernel,
        out_shape=jax.ShapeDtypeStruct((T * batch, nx), jnp.float32),
        grid=(num_chunks,),
        in_specs=[
            pl.BlockSpec((nx, nx), lambda c: (0, 0)),            # A.weight
            pl.BlockSpec((nx, nx), lambda c: (0, 0)),            # A.scalar
            pl.BlockSpec((n_m, n_dT, nx), lambda c: (0, 0, 0)),  # folded Bilinear∘B
            pl.BlockSpec((nd, nx), lambda c: (0, 0)),            # E.weight.T
            pl.BlockSpec((batch, nx), lambda c: (0, 0)),         # x0
            pl.BlockSpec((rows, n_m), lambda c: (c, 0)),         # M_flow chunk
            pl.BlockSpec((rows, n_dT), lambda c: (c, 0)),        # DT chunk
            pl.BlockSpec((rows, nd), lambda c: (c, 0)),          # D chunk
        ],
        out_specs=pl.BlockSpec((rows, nx), lambda c: (c, 0)),    # X chunk (slab)
        scratch_shapes=[
            pltpu.VMEM((batch, nx), jnp.float32),   # carried state x
            pltpu.VMEM((nx, nx), jnp.float32),      # A_eff^T (computed once)
        ],
        compiler_params=pltpu.CompilerParams(
            dimension_semantics=("arbitrary",)),    # sequential recurrence
    )(a_w, a_s, G, e_T, x, M2, DT2, D2)

    X = X2.reshape(T, batch, nx)
    Y = X[:, :, -1]                                # Y sliced outside the kernel
    return X, Y


def ssm_gray_ref(params, x, M_flow, DT, D):
    """Pure-JAX reference matching the PyTorch module."""
    a_w, a_s, b_w, e_w, hf_w = params
    eff = ((1.0 - 0.1 * jax.nn.sigmoid(a_s)) * jax.nn.softmax(a_w, axis=1)).T
    Xs, Ys = [], []
    for t in range(M_flow.shape[0]):
        u = jnp.einsum('bi,kij,bj->bk', M_flow[t], hf_w, DT[t])   # nn.Bilinear
        x = x @ eff + u @ b_w.T + D[t] @ e_w.T
        Xs.append(x)
        Ys.append(x[:, -1])
    return jnp.stack(Xs), jnp.stack(Ys)


if __name__ == "__main__":
    nx, n_m, n_dT, nu, nd, batch, T = 16, 4, 4, 4, 4, 8, 8

    key = jax.random.PRNGKey(0)
    k = jax.random.split(key, 9)
    # Deterministic synthetic parameters (shapes from SSM_gray.__init__).
    a_w = jax.random.uniform(k[0], (nx, nx), jnp.float32)               # A.weight
    a_s = jax.random.uniform(k[1], (nx, nx), jnp.float32)               # A.scalar
    b_w = jax.random.uniform(k[2], (nx, nu), jnp.float32, -0.5, 0.5)    # B.weight
    e_w = jax.random.uniform(k[3], (nx, nd), jnp.float32, -0.5, 0.5)    # E.weight
    hf_w = jax.random.uniform(k[4], (nu, n_m, n_dT), jnp.float32, -0.5, 0.5)  # hf (Bilinear) weight
    params = (a_w, a_s, b_w, e_w, hf_w)

    x0 = jax.random.normal(k[5], (batch, nx), jnp.float32)
    M_flow = jax.random.uniform(k[6], (T, batch, n_m), jnp.float32)
    DT = jax.random.normal(k[7], (T, batch, n_dT), jnp.float32)
    D = jax.random.normal(k[8], (T, batch, nd), jnp.float32)

    X, Y = ssm_gray_forward(params, x0, M_flow, DT, D)
    jax.block_until_ready((X, Y))

    Xr, Yr = ssm_gray_ref(params, x0, M_flow, DT, D)
    assert X.shape == (T, batch, nx) and Y.shape == (T, batch)
    assert jnp.allclose(X, Xr, rtol=1e-4, atol=1e-4), float(jnp.max(jnp.abs(X - Xr)))
    assert jnp.allclose(Y, Yr, rtol=1e-4, atol=1e-4)

    print("KERNEL_OK")
</pallas_src>

<mosaic_0001>
module attributes {stable_mosaic.version = 11 : i64} {
  func.func @kernel(%arg0: i32, %arg1: memref<16x16xf32, #tpu.memory_space<vmem>>, %arg2: memref<16x16xf32, #tpu.memory_space<vmem>>, %arg3: memref<4x4x16xf32, #tpu.memory_space<vmem>>, %arg4: memref<4x16xf32, #tpu.memory_space<vmem>>, %arg5: memref<8x16xf32, #tpu.memory_space<vmem>>, %arg6: memref<64x4xf32, #tpu.memory_space<vmem>>, %arg7: memref<64x4xf32, #tpu.memory_space<vmem>>, %arg8: memref<64x4xf32, #tpu.memory_space<vmem>>, %arg9: memref<64x16xf32, #tpu.memory_space<vmem>>, %arg10: memref<8x16xf32, #tpu.memory_space<vmem>>, %arg11: memref<16x16xf32, #tpu.memory_space<vmem>>) attributes {dimension_semantics = [#tpu.dimension_semantics<arbitrary>], iteration_bounds = array<i64: 1>, scalar_prefetch = 0 : i64, scratch_operands = 2 : i64, tpu.core_type = #tpu.core_type<tc>, window_params = [{pipeline_mode = #tpu.pipeline_mode<synchronous>, transform_indices = @transform_0, window_bounds = array<i64: 16, 16>}, {pipeline_mode = #tpu.pipeline_mode<synchronous>, transform_indices = @transform_1, window_bounds = array<i64: 16, 16>}, {pipeline_mode = #tpu.pipeline_mode<synchronous>, transform_indices = @transform_2, window_bounds = array<i64: 4, 4, 16>}, {pipeline_mode = #tpu.pipeline_mode<synchronous>, transform_indices = @transform_3, window_bounds = array<i64: 4, 16>}, {pipeline_mode = #tpu.pipeline_mode<synchronous>, transform_indices = @transform_4, window_bounds = array<i64: 8, 16>}, {transform_indices = @transform_5, window_bounds = array<i64: 64, 4>}, {transform_indices = @transform_6, window_bounds = array<i64: 64, 4>}, {transform_indices = @transform_7, window_bounds = array<i64: 64, 4>}, {transform_indices = @transform_8, window_bounds = array<i64: 64, 16>}]} {
    %c0_i32 = arith.constant 0 : i32
    %0 = arith.cmpi eq, %arg0, %c0_i32 : i32
    %1 = arith.extui %0 : i1 to i32
    %c0_i32_0 = arith.constant 0 : i32
    %2 = arith.cmpi ne, %1, %c0_i32_0 : i32
    scf.if %2 {
      %c0_62 = arith.constant 0 : index
      %c0_63 = arith.constant 0 : index
      %104 = vector.load %arg1[%c0_62, %c0_63] : memref<16x16xf32, #tpu.memory_space<vmem>>, vector<16x16xf32>
      %cst_64 = arith.constant dense<0xFF800000> : vector<16xf32>
      %105 = vector.multi_reduction <maximumf>, %104, %cst_64 [1] : vector<16x16xf32> to vector<16xf32>
      %106 = vector.shape_cast %105 : vector<16xf32> to vector<16x1xf32>
      %107 = vector.broadcast %106 : vector<16x1xf32> to vector<16x16xf32>
      %108 = arith.subf %104, %107 : vector<16x16xf32>
      %109 = math.exp %108 : vector<16x16xf32>
      %cst_65 = arith.constant dense<0.000000e+00> : vector<16xf32>
      %110 = vector.multi_reduction <add>, %109, %cst_65 [1] : vector<16x16xf32> to vector<16xf32>
      %111 = vector.shape_cast %110 : vector<16xf32> to vector<16x1xf32>
      %112 = vector.broadcast %111 : vector<16x1xf32> to vector<16x16xf32>
      %113 = arith.divf %109, %112 : vector<16x16xf32>
      %c0_66 = arith.constant 0 : index
      %c0_67 = arith.constant 0 : index
      %114 = vector.load %arg2[%c0_66, %c0_67] : memref<16x16xf32, #tpu.memory_space<vmem>>, vector<16x16xf32>
      %115 = arith.negf %114 : vector<16x16xf32>
      %116 = math.exp %115 : vector<16x16xf32>
      %cst_68 = arith.constant 1.000000e+00 : f32
      %117 = vector.broadcast %cst_68 : f32 to vector<16x16xf32>
      %118 = arith.addf %117, %116 : vector<16x16xf32>
      %119 = arith.divf %117, %118 : vector<16x16xf32>
      %cst_69 = arith.constant 1.000000e-01 : f32
      %120 = vector.broadcast %cst_69 : f32 to vector<16x16xf32>
      %121 = arith.mulf %120, %119 : vector<16x16xf32>
      %cst_70 = arith.constant 1.000000e+00 : f32
      %122 = vector.broadcast %cst_70 : f32 to vector<16x16xf32>
      %123 = arith.subf %122, %121 : vector<16x16xf32>
      %124 = arith.mulf %123, %113 : vector<16x16xf32>
      %125 = tpu.transpose %124, [1, 0] : vector<16x16xf32> -> vector<16x16xf32>
      %c0_71 = arith.constant 0 : index
      %c0_72 = arith.constant 0 : index
      %126 = vector.load %arg11[%c0_71, %c0_72] : memref<16x16xf32, #tpu.memory_space<vmem>>, vector<16x16xf32>
      tpu.vector_store %arg11[%c0_71, %c0_72], %125 {strides = array<i32>} : memref<16x16xf32, #tpu.memory_space<vmem>>, vector<16x16xf32>,
      %c0_73 = arith.constant 0 : index
      %c0_74 = arith.constant 0 : index
      %127 = vector.load %arg5[%c0_73, %c0_74] : memref<8x16xf32, #tpu.memory_space<vmem>>, vector<8x16xf32>
      %c0_75 = arith.constant 0 : index
      %c0_76 = arith.constant 0 : index
      %128 = vector.load %arg10[%c0_75, %c0_76] : memref<8x16xf32, #tpu.memory_space<vmem>>, vector<8x16xf32>
      tpu.vector_store %arg10[%c0_75, %c0_76], %127 {strides = array<i32>} : memref<8x16xf32, #tpu.memory_space<vmem>>, vector<8x16xf32>,
    } else {
    }
    %c0 = arith.constant 0 : index
    %c0_1 = arith.constant 0 : index
    %3 = vector.load %arg6[%c0, %c0_1] : memref<64x4xf32, #tpu.memory_space<vmem>>, vector<64x4xf32>
    %c0_2 = arith.constant 0 : index
    %c0_3 = arith.constant 0 : index
    %4 = vector.load %arg7[%c0_2, %c0_3] : memref<64x4xf32, #tpu.memory_space<vmem>>, vector<64x4xf32>
    %c0_4 = arith.constant 0 : index
    %c0_5 = arith.constant 0 : index
    %5 = vector.load %arg8[%c0_4, %c0_5] : memref<64x4xf32, #tpu.memory_space<vmem>>, vector<64x4xf32>
    %c0_6 = arith.constant 0 : index
    %c0_7 = arith.constant 0 : index
    %6 = vector.load %arg4[%c0_6, %c0_7] : memref<4x16xf32, #tpu.memory_space<vmem>>, vector<4x16xf32>
    %cst = arith.constant dense<0.000000e+00> : vector<64x16xf32>
    %7 = tpu.matmul %5, %6, %cst {dimension_numbers = #tpu.dot_dimension_numbers<[1], [0], [0], [1], [0, 0, 1, 1], [], []>} : vector<64x4xf32>, vector<4x16xf32>, vector<64x16xf32> -> vector<64x16xf32>
    %8 = vector.extract_strided_slice %3 {offsets = [0, 0], sizes = [64, 1], strides = [1, 1]} : vector<64x4xf32> to vector<64x1xf32>
    %9 = vector.broadcast %8 : vector<64x1xf32> to vector<64x4xf32>
    %10 = arith.mulf %9, %4 : vector<64x4xf32>
    %c0_8 = arith.constant 0 : index
    %c0_9 = arith.constant 0 : index
    %c0_10 = arith.constant 0 : index
    %11 = vector.load %arg3[%c0_8, %c0_9, %c0_10] : memref<4x4x16xf32, #tpu.memory_space<vmem>>, vector<1x4x16xf32>
    %12 = vector.shape_cast %11 : vector<1x4x16xf32> to vector<4x16xf32>
    %cst_11 = arith.constant dense<0.000000e+00> : vector<64x16xf32>
    %13 = tpu.matmul %10, %12, %cst_11 {dimension_numbers = #tpu.dot_dimension_numbers<[1], [0], [0], [1], [0, 0, 1, 1], [], []>} : vector<64x4xf32>, vector<4x16xf32>, vector<64x16xf32> -> vector<64x16xf32>
    %14 = arith.addf %7, %13 : vector<64x16xf32>
    %15 = vector.extract_strided_slice %3 {offsets = [0, 1], sizes = [64, 1], strides = [1, 1]} : vector<64x4xf32> to vector<64x1xf32>
    %16 = vector.broadcast %15 : vector<64x1xf32> to vector<64x4xf32>
    %17 = arith.mulf %16, %4 : vector<64x4xf32>
    %c1 = arith.constant 1 : index
    %c0_12 = arith.constant 0 : index
    %c0_13 = arith.constant 0 : index
    %18 = vector.load %arg3[%c1, %c0_12, %c0_13] : memref<4x4x16xf32, #tpu.memory_space<vmem>>, vector<1x4x16xf32>
    %19 = vector.shape_cast %18 : vector<1x4x16xf32> to vector<4x16xf32>
    %cst_14 = arith.constant dense<0.000000e+00> : vector<64x16xf32>
    %20 = tpu.matmul %17, %19, %cst_14 {dimension_numbers = #tpu.dot_dimension_numbers<[1], [0], [0], [1], [0, 0, 1, 1], [], []>} : vector<64x4xf32>, vector<4x16xf32>, vector<64x16xf32> -> vector<64x16xf32>
    %21 = arith.addf %14, %20 : vector<64x16xf32>
    %22 = vector.extract_strided_slice %3 {offsets = [0, 2], sizes = [64, 1], strides = [1, 1]} : vector<64x4xf32> to vector<64x1xf32>
    %23 = vector.broadcast %22 : vector<64x1xf32> to vector<64x4xf32>
    %24 = arith.mulf %23, %4 : vector<64x4xf32>
    %c2 = arith.constant 2 : index
    %c0_15 = arith.constant 0 : index
    %c0_16 = arith.constant 0 : index
    %25 = vector.load %arg3[%c2, %c0_15, %c0_16] : memref<4x4x16xf32, #tpu.memory_space<vmem>>, vector<1x4x16xf32>
    %26 = vector.shape_cast %25 : vector<1x4x16xf32> to vector<4x16xf32>
    %cst_17 = arith.constant dense<0.000000e+00> : vector<64x16xf32>
    %27 = tpu.matmul %24, %26, %cst_17 {dimension_numbers = #tpu.dot_dimension_numbers<[1], [0], [0], [1], [0, 0, 1, 1], [], []>} : vector<64x4xf32>, vector<4x16xf32>, vector<64x16xf32> -> vector<64x16xf32>
    %28 = arith.addf %21, %27 : vector<64x16xf32>
    %29 = vector.extract_strided_slice %3 {offsets = [0, 3], sizes = [64, 1], strides = [1, 1]} : vector<64x4xf32> to vector<64x1xf32>
    %30 = vector.broadcast %29 : vector<64x1xf32> to vector<64x4xf32>
    %31 = arith.mulf %30, %4 : vector<64x4xf32>
    %c3 = arith.constant 3 : index
    %c0_18 = arith.constant 0 : index
    %c0_19 = arith.constant 0 : index
    %32 = vector.load %arg3[%c3, %c0_18, %c0_19] : memref<4x4x16xf32, #tpu.memory_space<vmem>>, vector<1x4x16xf32>
    %33 = vector.shape_cast %32 : vector<1x4x16xf32> to vector<4x16xf32>
    %cst_20 = arith.constant dense<0.000000e+00> : vector<64x16xf32>
    %34 = tpu.matmul %31, %33, %cst_20 {dimension_numbers = #tpu.dot_dimension_numbers<[1], [0], [0], [1], [0, 0, 1, 1], [], []>} : vector<64x4xf32>, vector<4x16xf32>, vector<64x16xf32> -> vector<64x16xf32>
    %35 = arith.addf %28, %34 : vector<64x16xf32>
    %c0_21 = arith.constant 0 : index
    %c0_22 = arith.constant 0 : index
    %36 = vector.load %arg9[%c0_21, %c0_22] : memref<64x16xf32, #tpu.memory_space<vmem>>, vector<64x16xf32>
    tpu.vector_store %arg9[%c0_21, %c0_22], %35 {strides = array<i32>} : memref<64x16xf32, #tpu.memory_space<vmem>>, vector<64x16xf32>,
    %c0_23 = arith.constant 0 : index
    %c0_24 = arith.constant 0 : index
    %37 = vector.load %arg11[%c0_23, %c0_24] : memref<16x16xf32, #tpu.memory_space<vmem>>, vector<16x16xf32>
    %c0_25 = arith.constant 0 : index
    %c0_26 = arith.constant 0 : index
    %38 = vector.load %arg10[%c0_25, %c0_26] : memref<8x16xf32, #tpu.memory_space<vmem>>, vector<8x16xf32>
    %c0_i32_27 = arith.constant 0 : i32
    %c8_i32 = arith.constant 8 : i32
    %39 = arith.muli %c0_i32_27, %c8_i32 : i32
    %40 = tpu.assume_multiple %39, 8 : i32
    %cst_28 = arith.constant dense<0.000000e+00> : vector<8x16xf32>
    %41 = tpu.matmul %38, %37, %cst_28 {dimension_numbers = #tpu.dot_dimension_numbers<[1], [0], [0], [1], [0, 0, 1, 1], [], []>} : vector<8x16xf32>, vector<16x16xf32>, vector<8x16xf32> -> vector<8x16xf32>
    %42 = arith.index_cast %40 : i32 to index
    %c0_29 = arith.constant 0 : index
    %43 = vector.load %arg9[%42, %c0_29] : memref<64x16xf32, #tpu.memory_space<vmem>>, vector<8x16xf32>
    %44 = arith.addf %41, %43 : vector<8x16xf32>
    %45 = arith.index_cast %40 : i32 to index
    %c0_30 = arith.constant 0 : index
    %46 = vector.load %arg9[%45, %c0_30] : memref<64x16xf32, #tpu.memory_space<vmem>>, vector<8x16xf32>
    tpu.vector_store %arg9[%45, %c0_30], %44 {strides = array<i32>} : memref<64x16xf32, #tpu.memory_space<vmem>>, vector<8x16xf32>,
    %c1_i32 = arith.constant 1 : i32
    %c8_i32_31 = arith.constant 8 : i32
    %47 = arith.muli %c1_i32, %c8_i32_31 : i32
    %48 = tpu.assume_multiple %47, 8 : i32
    %cst_32 = arith.constant dense<0.000000e+00> : vector<8x16xf32>
    %49 = tpu.matmul %44, %37, %cst_32 {dimension_numbers = #tpu.dot_dimension_numbers<[1], [0], [0], [1], [0, 0, 1, 1], [], []>} : vector<8x16xf32>, vector<16x16xf32>, vector<8x16xf32> -> vector<8x16xf32>
    %50 = arith.index_cast %48 : i32 to index
    %c0_33 = arith.constant 0 : index
    %51 = vector.load %arg9[%50, %c0_33] : memref<64x16xf32, #tpu.memory_space<vmem>>, vector<8x16xf32>
    %52 = arith.addf %49, %51 : vector<8x16xf32>
    %53 = arith.index_cast %48 : i32 to index
    %c0_34 = arith.constant 0 : index
    %54 = vector.load %arg9[%53, %c0_34] : memref<64x16xf32, #tpu.memory_space<vmem>>, vector<8x16xf32>
    tpu.vector_store %arg9[%53, %c0_34], %52 {strides = array<i32>} : memref<64x16xf32, #tpu.memory_space<vmem>>, vector<8x16xf32>,
    %c2_i32 = arith.constant 2 : i32
    %c8_i32_35 = arith.constant 8 : i32
    %55 = arith.muli %c2_i32, %c8_i32_35 : i32
    %56 = tpu.assume_multiple %55, 8 : i32
    %cst_36 = arith.constant dense<0.000000e+00> : vector<8x16xf32>
    %57 = tpu.matmul %52, %37, %cst_36 {dimension_numbers = #tpu.dot_dimension_numbers<[1], [0], [0], [1], [0, 0, 1, 1], [], []>} : vector<8x16xf32>, vector<16x16xf32>, vector<8x16xf32> -> vector<8x16xf32>
    %58 = arith.index_cast %56 : i32 to index
    %c0_37 = arith.constant 0 : index
    %59 = vector.load %arg9[%58, %c0_37] : memref<64x16xf32, #tpu.memory_space<vmem>>, vector<8x16xf32>
    %60 = arith.addf %57, %59 : vector<8x16xf32>
    %61 = arith.index_cast %56 : i32 to index
    %c0_38 = arith.constant 0 : index
    %62 = vector.load %arg9[%61, %c0_38] : memref<64x16xf32, #tpu.memory_space<vmem>>, vector<8x16xf32>
    tpu.vector_store %arg9[%61, %c0_38], %60 {strides = array<i32>} : memref<64x16xf32, #tpu.memory_space<vmem>>, vector<8x16xf32>,
    %c3_i32 = arith.constant 3 : i32
    %c8_i32_39 = arith.constant 8 : i32
    %63 = arith.muli %c3_i32, %c8_i32_39 : i32
    %64 = tpu.assume_multiple %63, 8 : i32
    %cst_40 = arith.constant dense<0.000000e+00> : vector<8x16xf32>
    %65 = tpu.matmul %60, %37, %cst_40 {dimension_numbers = #tpu.dot_dimension_numbers<[1], [0], [0], [1], [0, 0, 1, 1], [], []>} : vector<8x16xf32>, vector<16x16xf32>, vector<8x16xf32> -> vector<8x16xf32>
    %66 = arith.index_cast %64 : i32 to index
    %c0_41 = arith.constant 0 : index
    %67 = vector.load %arg9[%66, %c0_41] : memref<64x16xf32, #tpu.memory_space<vmem>>, vector<8x16xf32>
    %68 = arith.addf %65, %67 : vector<8x16xf32>
    %69 = arith.index_cast %64 : i32 to index
    %c0_42 = arith.constant 0 : index
    %70 = vector.load %arg9[%69, %c0_42] : memref<64x16xf32, #tpu.memory_space<vmem>>, vector<8x16xf32>
    tpu.vector_store %arg9[%69, %c0_42], %68 {strides = array<i32>} : memref<64x16xf32, #tpu.memory_space<vmem>>, vector<8x16xf32>,
    %c4_i32 = arith.constant 4 : i32
    %c8_i32_43 = arith.constant 8 : i32
    %71 = arith.muli %c4_i32, %c8_i32_43 : i32
    %72 = tpu.assume_multiple %71, 8 : i32
    %cst_44 = arith.constant dense<0.000000e+00> : vector<8x16xf32>
    %73 = tpu.matmul %68, %37, %cst_44 {dimension_numbers = #tpu.dot_dimension_numbers<[1], [0], [0], [1], [0, 0, 1, 1], [], []>} : vector<8x16xf32>, vector<16x16xf32>, vector<8x16xf32> -> vector<8x16xf32>
    %74 = arith.index_cast %72 : i32 to index
    %c0_45 = arith.constant 0 : index
    %75 = vector.load %arg9[%74, %c0_45] : memref<64x16xf32, #tpu.memory_space<vmem>>, vector<8x16xf32>
    %76 = arith.addf %73, %75 : vector<8x16xf32>
    %77 = arith.index_cast %72 : i32 to index
    %c0_46 = arith.constant 0 : index
    %78 = vector.load %arg9[%77, %c0_46] : memref<64x16xf32, #tpu.memory_space<vmem>>, vector<8x16xf32>
    tpu.vector_store %arg9[%77, %c0_46], %76 {strides = array<i32>} : memref<64x16xf32, #tpu.memory_space<vmem>>, vector<8x16xf32>,
    %c5_i32 = arith.constant 5 : i32
    %c8_i32_47 = arith.constant 8 : i32
    %79 = arith.muli %c5_i32, %c8_i32_47 : i32
    %80 = tpu.assume_multiple %79, 8 : i32
    %cst_48 = arith.constant dense<0.000000e+00> : vector<8x16xf32>
    %81 = tpu.matmul %76, %37, %cst_48 {dimension_numbers = #tpu.dot_dimension_numbers<[1], [0], [0], [1], [0, 0, 1, 1], [], []>} : vector<8x16xf32>, vector<16x16xf32>, vector<8x16xf32> -> vector<8x16xf32>
    %82 = arith.index_cast %80 : i32 to index
    %c0_49 = arith.constant 0 : index
    %83 = vector.load %arg9[%82, %c0_49] : memref<64x16xf32, #tpu.memory_space<vmem>>, vector<8x16xf32>
    %84 = arith.addf %81, %83 : vector<8x16xf32>
    %85 = arith.index_cast %80 : i32 to index
    %c0_50 = arith.constant 0 : index
    %86 = vector.load %arg9[%85, %c0_50] : memref<64x16xf32, #tpu.memory_space<vmem>>, vector<8x16xf32>
    tpu.vector_store %arg9[%85, %c0_50], %84 {strides = array<i32>} : memref<64x16xf32, #tpu.memory_space<vmem>>, vector<8x16xf32>,
    %c6_i32 = arith.constant 6 : i32
    %c8_i32_51 = arith.constant 8 : i32
    %87 = arith.muli %c6_i32, %c8_i32_51 : i32
    %88 = tpu.assume_multiple %87, 8 : i32
    %cst_52 = arith.constant dense<0.000000e+00> : vector<8x16xf32>
    %89 = tpu.matmul %84, %37, %cst_52 {dimension_numbers = #tpu.dot_dimension_numbers<[1], [0], [0], [1], [0, 0, 1, 1], [], []>} : vector<8x16xf32>, vector<16x16xf32>, vector<8x16xf32> -> vector<8x16xf32>
    %90 = arith.index_cast %88 : i32 to index
    %c0_53 = arith.constant 0 : index
    %91 = vector.load %arg9[%90, %c0_53] : memref<64x16xf32, #tpu.memory_space<vmem>>, vector<8x16xf32>
    %92 = arith.addf %89, %91 : vector<8x16xf32>
    %93 = arith.index_cast %88 : i32 to index
    %c0_54 = arith.constant 0 : index
    %94 = vector.load %arg9[%93, %c0_54] : memref<64x16xf32, #tpu.memory_space<vmem>>, vector<8x16xf32>
    tpu.vector_store %arg9[%93, %c0_54], %92 {strides = array<i32>} : memref<64x16xf32, #tpu.memory_space<vmem>>, vector<8x16xf32>,
    %c7_i32 = arith.constant 7 : i32
    %c8_i32_55 = arith.constant 8 : i32
    %95 = arith.muli %c7_i32, %c8_i32_55 : i32
    %96 = tpu.assume_multiple %95, 8 : i32
    %cst_56 = arith.constant dense<0.000000e+00> : vector<8x16xf32>
    %97 = tpu.matmul %92, %37, %cst_56 {dimension_numbers = #tpu.dot_dimension_numbers<[1], [0], [0], [1], [0, 0, 1, 1], [], []>} : vector<8x16xf32>, vector<16x16xf32>, vector<8x16xf32> -> vector<8x16xf32>
    %98 = arith.index_cast %96 : i32 to index
    %c0_57 = arith.constant 0 : index
    %99 = vector.load %arg9[%98, %c0_57] : memref<64x16xf32, #tpu.memory_space<vmem>>, vector<8x16xf32>
    %100 = arith.addf %97, %99 : vector<8x16xf32>
    %101 = arith.index_cast %96 : i32 to index
    %c0_58 = arith.constant 0 : index
    %102 = vector.load %arg9[%101, %c0_58] : memref<64x16xf32, #tpu.memory_space<vmem>>, vector<8x16xf32>
    tpu.vector_store %arg9[%101, %c0_58], %100 {strides = array<i32>} : memref<64x16xf32, #tpu.memory_space<vmem>>, vector<8x16xf32>,
    %c8_i32_59 = arith.constant 8 : i32
    %c0_60 = arith.constant 0 : index
    %c0_61 = arith.constant 0 : index
    %103 = vector.load %arg10[%c0_60, %c0_61] : memref<8x16xf32, #tpu.memory_space<vmem>>, vector<8x16xf32>
    tpu.vector_store %arg10[%c0_60, %c0_61], %100 {strides = array<i32>} : memref<8x16xf32, #tpu.memory_space<vmem>>, vector<8x16xf32>,
    return
  }
  func.func @transform_0(%arg0: i32) -> (i32, i32) {
    %c0_i32 = arith.constant 0 : i32
    %c0_i32_0 = arith.constant 0 : i32
    %c0_i32_1 = arith.constant 0 : i32
    return %c0_i32, %c0_i32_0 : i32, i32
  }
  func.func @transform_1(%arg0: i32) -> (i32, i32) {
    %c0_i32 = arith.constant 0 : i32
    %c0_i32_0 = arith.constant 0 : i32
    %c0_i32_1 = arith.constant 0 : i32
    return %c0_i32, %c0_i32_0 : i32, i32
  }
  func.func @transform_2(%arg0: i32) -> (i32, i32, i32) {
    %c0_i32 = arith.constant 0 : i32
    %c0_i32_0 = arith.constant 0 : i32
    %c0_i32_1 = arith.constant 0 : i32
    %c0_i32_2 = arith.constant 0 : i32
    return %c0_i32, %c0_i32_0, %c0_i32_1 : i32, i32, i32
  }
  func.func @transform_3(%arg0: i32) -> (i32, i32) {
    %c0_i32 = arith.constant 0 : i32
    %c0_i32_0 = arith.constant 0 : i32
    %c0_i32_1 = arith.constant 0 : i32
    return %c0_i32, %c0_i32_0 : i32, i32
  }
  func.func @transform_4(%arg0: i32) -> (i32, i32) {
    %c0_i32 = arith.constant 0 : i32
    %c0_i32_0 = arith.constant 0 : i32
    %c0_i32_1 = arith.constant 0 : i32
    return %c0_i32, %c0_i32_0 : i32, i32
  }
  func.func @transform_5(%arg0: i32) -> (i32, i32) {
    %c0_i32 = arith.constant 0 : i32
    %c0_i32_0 = arith.constant 0 : i32
    return %arg0, %c0_i32 : i32, i32
  }
  func.func @transform_6(%arg0: i32) -> (i32, i32) {
    %c0_i32 = arith.constant 0 : i32
    %c0_i32_0 = arith.constant 0 : i32
    return %arg0, %c0_i32 : i32, i32
  }
  func.func @transform_7(%arg0: i32) -> (i32, i32) {
    %c0_i32 = arith.constant 0 : i32
    %c0_i32_0 = arith.constant 0 : i32
    return %arg0, %c0_i32 : i32, i32
  }
  func.func @transform_8(%arg0: i32) -> (i32, i32) {
    %c0_i32 = arith.constant 0 : i32
    %c0_i32_0 = arith.constant 0 : i32
    return %arg0, %c0_i32 : i32, i32
  }
}

</mosaic_0001>

<llo_original>
// kernel: tpu_custom_call.1
$region0: #{tpu_custom_call.1}
  #allocation0 [shape = 'u32[]', space=smem, size = 0x4, offset = 0x4, fixed_abs, tag = 'smem constant byte address 0x4 - core index']
  #allocation1 [shape = 'u32[144,128]{1,0:T(1,128)}', space=vmem, size = 0x12000, scoped, tag = 'internal scratch']
  #allocation2 [shape = 'f32[8,16]{1,0:T(8,128)}', space=vmem, size = 0x1000, scoped, tag = 'scratch operand']
  #allocation3 [shape = 'f32[16,16]{1,0:T(8,128)}', space=vmem, size = 0x2000, scoped, tag = 'scratch operand']
  %s0 = inlined_call_operand.vmem [shape: f32[16,16], index: 0, kind: input, shape index: {}]
  %s1 = inlined_call_operand.vmem [shape: f32[16,16], index: 1, kind: input, shape index: {}]
  %s2 = inlined_call_operand.vmem [shape: f32[4,4,16], index: 2, kind: input, shape index: {}]
  %s3 = inlined_call_operand.vmem [shape: f32[4,16], index: 3, kind: input, shape index: {}]
  %s4 = inlined_call_operand.vmem [shape: f32[8,16], index: 4, kind: input, shape index: {}]
  %s5 = inlined_call_operand.vmem [shape: f32[64,4], index: 5, kind: input, shape index: {}]
  %s6 = inlined_call_operand.vmem [shape: f32[64,4], index: 6, kind: input, shape index: {}]
  %s7 = inlined_call_operand.vmem [shape: f32[64,4], index: 7, kind: input, shape index: {}]
  %s8 = inlined_call_operand.vmem [shape: f32[64,16], index: 8, kind: output, shape index: {}]
  %s9 = sld [smem:[#allocation0]]
  $region46: #{tpu_custom_call.1} parent=0
    _
  %s11 = ssub.s32 1, %s9
  %s12 = scalar_select 0, %s11, %s9
  // Predicated region
  $region2: #{tpu_custom_call.1} parent=0 // pred_check
    _
  $region3: #{tpu_custom_call.1} parent=0 // pred_check_branch
    %14 = sbr.rel (0) target = $region5
  $region4: #{tpu_custom_call.1} parent=0 // pred_region
    _
  $region5: #{tpu_custom_call.1} parent=0 // pred_fallthru
    _
  // Predicated region
  $region6: #{tpu_custom_call.1} parent=0 // pred_check
    _
  $region7: #{tpu_custom_call.1} parent=0 // pred_check_branch
    %16 = sbr.rel (0) target = $region9
  $region8: #{tpu_custom_call.1} parent=0 // pred_region
    _
  $region9: #{tpu_custom_call.1} parent=0 // pred_fallthru
    _
  // Predicated region
  $region10: #{tpu_custom_call.1} parent=0 // pred_check
    _
  $region11: #{tpu_custom_call.1} parent=0 // pred_check_branch
    %18 = sbr.rel (0) target = $region13
  $region12: #{tpu_custom_call.1} parent=0 // pred_region
    _
  $region13: #{tpu_custom_call.1} parent=0 // pred_fallthru
    _
  // Predicated region
  $region14: #{tpu_custom_call.1} parent=0 // pred_check
    _
  $region15: #{tpu_custom_call.1} parent=0 // pred_check_branch
    %20 = sbr.rel (0) target = $region17
  $region16: #{tpu_custom_call.1} parent=0 // pred_region
    _
  $region17: #{tpu_custom_call.1} parent=0 // pred_fallthru
    _
  // Predicated region
  $region18: #{tpu_custom_call.1} parent=0 // pred_check
    _
  $region19: #{tpu_custom_call.1} parent=0 // pred_check_branch
    %22 = sbr.rel (0) target = $region21
  $region20: #{tpu_custom_call.1} parent=0 // pred_region
    _
  $region21: #{tpu_custom_call.1} parent=0 // pred_fallthru
    _
  // Predicated region
  $region22: #{tpu_custom_call.1} parent=0 // pred_check
    _
  $region23: #{tpu_custom_call.1} parent=0 // pred_check_branch
    %24 = sbr.rel (0) target = $region25
  $region24: #{tpu_custom_call.1} parent=0 // pred_region
    _
  $region25: #{tpu_custom_call.1} parent=0 // pred_fallthru
    _
  // Predicated region
  $region26: #{tpu_custom_call.1} parent=0 // pred_check
    _
  $region27: #{tpu_custom_call.1} parent=0 // pred_check_branch
    %26 = sbr.rel (0) target = $region29
  $region28: #{tpu_custom_call.1} parent=0 // pred_region
    _
  $region29: #{tpu_custom_call.1} parent=0 // pred_fallthru
    _
  // Predicated region
  $region30: #{tpu_custom_call.1} parent=0 // pred_check
    _
  $region31: #{tpu_custom_call.1} parent=0 // pred_check_branch
    %28 = sbr.rel (0) target = $region33
  $region32: #{tpu_custom_call.1} parent=0 // pred_region
    _
  $region33: #{tpu_custom_call.1} parent=0 // pred_fallthru
    _
  %p29 = scmp.eq.s32.totalorder 0, 0
  // Predicated region
  $region34: #{tpu_custom_call.1} parent=0 // pred_check
    %p30 = pneg %p29
  $region35: #{tpu_custom_call.1} parent=0 // pred_check_branch
    %32 = sbr.rel (%p30) target = $region37
  $region36: #{tpu_custom_call.1} parent=0 // pred_region
    %v33 = vld [vmem:[%s0] sm:$0xff]
    %v34 = vld [vmem:[%s0 + $0x8] sm:$0xff]
    %vm35 = vcmask 130048
    %v36 = vsel %vm35, %v33, -inf
    %37 = vmax.xlane.f32.xlu0 %v36
    %v38 = vpop.xlane.xlu0 %37
    %v39 = vsel %vm35, %v34, -inf
    %40 = vmax.xlane.f32.xlu0 %v39
    %v41 = vpop.xlane.xlu0 %40
    %v42 = vsub.f32 %v33, %v38
    %v43 = vsub.f32 %v34, %v41
    %v44 = vmul.f32 %v42, 1.442695
    %v45 = vpow.pop %v44
    %v46 = vmul.f32 %v43, 1.442695
    %v47 = vpow.pop %v46
    %v48 = vsel %vm35, %v45, 0.0
    %49 = vadd.xlane.f32.xlu0 %v48
    %v50 = vpop.xlane.xlu0 %49
    %v51 = vsel %vm35, %v47, 0.0
    %52 = vadd.xlane.f32.xlu0 %v51
    %v53 = vpop.xlane.xlu0 %52
    %v54 = vrcp.pop %v50
    %v55 = vmul.f32 %v45, %v54
    %v56 = vrcp.pop %v53
    %v57 = vmul.f32 %v47, %v56
    %v58 = vld [vmem:[%s1] sm:$0xff]
    %v59 = vld [vmem:[%s1 + $0x8] sm:$0xff]
    %v60 = vxor.u32 %v58, 2147483648
    %v61 = vxor.u32 %v59, 2147483648
    %v62 = vmul.f32 %v60, 1.442695
    %v63 = vpow.pop %v62
    %v64 = vmul.f32 %v61, 1.442695
    %v65 = vpow.pop %v64
    %v66 = vadd.f32 %v63, 1.0
    %v67 = vadd.f32 %v65, 1.0
    %v68 = vrcp.pop %v66
    %v69 = vmul.f32 1.0, %v68
    %v70 = vrcp.pop %v67
    %v71 = vmul.f32 1.0, %v70
    %v72 = vmul.f32 %v69, 0.1
    %v73 = vmul.f32 %v71, 0.1
    %v74 = vsub.f32 1.0, %v72
    %v75 = vsub.f32 1.0, %v73
    %v76 = vmul.f32 %v74, %v55
    %v77 = vmul.f32 %v75, %v57
    %78 = vxpose.xlu0.b32.start [1/16] %v76, 128
    %79 = vxpose.xlu0.b32.cont [2/16] %v77, 128
    %80 = vxpose.xlu0.b32.cont [3/16] 0.0, 128
    %81 = vxpose.xlu0.b32.cont [4/16] 0.0, 128
    %82 = vxpose.xlu0.b32.cont [5/16] 0.0, 128
    %83 = vxpose.xlu0.b32.cont [6/16] 0.0, 128
    %84 = vxpose.xlu0.b32.cont [7/16] 0.0, 128
    %85 = vxpose.xlu0.b32.cont [8/16] 0.0, 128
    %86 = vxpose.xlu0.b32.cont [9/16] 0.0, 128
    %87 = vxpose.xlu0.b32.cont [10/16] 0.0, 128
    %88 = vxpose.xlu0.b32.cont [11/16] 0.0, 128
    %89 = vxpose.xlu0.b32.cont [12/16] 0.0, 128
    %90 = vxpose.xlu0.b32.cont [13/16] 0.0, 128
    %91 = vxpose.xlu0.b32.cont [14/16] 0.0, 128
    %92 = vxpose.xlu0.b32.cont [15/16] 0.0, 128
    %93 = vxpose.xlu0.b32.end [16/16] 0.0, 128
    %v94 = vpop.trf.xlu0
    %v95 = vpop.trf.xlu0
    %v96 = vpop.trf.xlu0
    %v97 = vpop.trf.xlu0
    %v98 = vpop.trf.xlu0
    %v99 = vpop.trf.xlu0
    %v100 = vpop.trf.xlu0
    %v101 = vpop.trf.xlu0
    %v102 = vpop.trf.xlu0
    %v103 = vpop.trf.xlu0
    %v104 = vpop.trf.xlu0
    %v105 = vpop.trf.xlu0
    %v106 = vpop.trf.xlu0
    %v107 = vpop.trf.xlu0
    %v108 = vpop.trf.xlu0
    %v109 = vpop.trf.xlu0
    %110 = vst.msk [vmem:[#allocation3] sm:$0xff] %vm35, %v94
    %111 = vst.msk [vmem:[#allocation3 + $0x8] sm:$0xff] %vm35, %v95
    %v112 = vld [vmem:[%s4] sm:$0xff]
    %113 = vst.msk [vmem:[#allocation2] sm:$0xff] %vm35, %v112
  $region37: #{tpu_custom_call.1} parent=0 // pred_fallthru
    _
  %v114 = vld [vmem:[%s5] sm:$0xff]
  %v115 = vld [vmem:[%s5 + $0x8] sm:$0xff]
  %v116 = vld [vmem:[%s5 + $0x10] sm:$0xff]
  %v117 = vld [vmem:[%s5 + $0x18] sm:$0xff]
  %v118 = vld [vmem:[%s5 + $0x20] sm:$0xff]
  %v119 = vld [vmem:[%s5 + $0x28] sm:$0xff]
  %v120 = vld [vmem:[%s5 + $0x30] sm:$0xff]
  %v121 = vld [vmem:[%s5 + $0x38] sm:$0xff]
  %v122 = vld [vmem:[%s6] sm:$0xff]
  %v123 = vld [vmem:[%s6 + $0x8] sm:$0xff]
  %v124 = vld [vmem:[%s6 + $0x10] sm:$0xff]
  %v125 = vld [vmem:[%s6 + $0x18] sm:$0xff]
  %v126 = vld [vmem:[%s6 + $0x20] sm:$0xff]
  %v127 = vld [vmem:[%s6 + $0x28] sm:$0xff]
  %v128 = vld [vmem:[%s6 + $0x30] sm:$0xff]
  %v129 = vld [vmem:[%s6 + $0x38] sm:$0xff]
  %v130 = vld [vmem:[%s7] sm:$0xff]
  %v131 = vld [vmem:[%s7 + $0x8] sm:$0xff]
  %v132 = vld [vmem:[%s7 + $0x10] sm:$0xff]
  %v133 = vld [vmem:[%s7 + $0x18] sm:$0xff]
  %v134 = vld [vmem:[%s7 + $0x20] sm:$0xff]
  %v135 = vld [vmem:[%s7 + $0x28] sm:$0xff]
  %v136 = vld [vmem:[%s7 + $0x30] sm:$0xff]
  %v137 = vld [vmem:[%s7 + $0x38] sm:$0xff]
  %v138 = vld [vmem:[%s3] sm:$0xf]
  %140 = vset.pattern.permute.xlu0 0
  %141 = vperm.xlu0 %140, %v114
  %v142 = vpop.permute.xlu0 %141
  %145 = vset.pattern.permute.xlu0 0
  %146 = vperm.xlu0 %145, %v115
  %v147 = vpop.permute.xlu0 %146
  %150 = vset.pattern.permute.xlu0 0
  %151 = vperm.xlu0 %150, %v116
  %v152 = vpop.permute.xlu0 %151
  %155 = vset.pattern.permute.xlu0 0
  %156 = vperm.xlu0 %155, %v117
  %v157 = vpop.permute.xlu0 %156
  %160 = vset.pattern.permute.xlu0 0
  %161 = vperm.xlu0 %160, %v118
  %v162 = vpop.permute.xlu0 %161
  %165 = vset.pattern.permute.xlu0 0
  %166 = vperm.xlu0 %165, %v119
  %v167 = vpop.permute.xlu0 %166
  %170 = vset.pattern.permute.xlu0 0
  %171 = vperm.xlu0 %170, %v120
  %v172 = vpop.permute.xlu0 %171
  %175 = vset.pattern.permute.xlu0 0
  %176 = vperm.xlu0 %175, %v121
  %v177 = vpop.permute.xlu0 %176
  %v179 = vmul.f32 %v142, %v122
  %v180 = vmul.f32 %v147, %v123
  %v181 = vmul.f32 %v152, %v124
  %v182 = vmul.f32 %v157, %v125
  %v183 = vmul.f32 %v162, %v126
  %v184 = vmul.f32 %v167, %v127
  %v185 = vmul.f32 %v172, %v128
  %v186 = vmul.f32 %v177, %v129
  %v187 = vld [vmem:[%s2] sm:$0xf]
  %vm188 = vcmask 31744
  %v190 = vsel %vm188, %v179, 0
  %v193 = vsel %vm188, %v180, 0
  %v196 = vsel %vm188, %v181, 0
  %v199 = vsel %vm188, %v182, 0
  %v202 = vsel %vm188, %v183, 0
  %v205 = vsel %vm188, %v184, 0
  %v208 = vsel %vm188, %v185, 0
  %v211 = vsel %vm188, %v186, 0
  %vm213 = vcmask 1043456
  %v215 = vsel %vm213, %v187, 0
  %217 = vmatprep.subr.mxu0 0.0
  %218 = vmatpush1.msra.mxu0 0.0
  %219 = vmatprep.subr.mxu0 0.0
  %220 = vmatpush1.msra.mxu0 0.0
  %221 = vmatprep.subr.mxu0 0.0
  %222 = vmatpush1.msra.mxu0 0.0
  %223 = vmatprep.subr.mxu0 0.0
  %224 = vmatpush1.msra.mxu0 0.0
  %225 = vmatprep.subr.mxu0 0.0
  %226 = vmatpush1.msra.mxu0 0.0
  %227 = vmatprep.subr.mxu0 0.0
  %228 = vmatpush1.msra.mxu0 0.0
  %229 = vmatprep.subr.mxu0 0.0
  %230 = vmatpush1.msra.mxu0 0.0
  %231 = vmatprep.subr.mxu0 0.0
  %232 = vmatpush1.msra.mxu0 0.0
  %233 = vmatprep.subr.mxu0 0.0
  %234 = vmatpush1.msra.mxu0 0.0
  %235 = vmatprep.subr.mxu0 0.0
  %236 = vmatpush1.msra.mxu0 0.0
  %237 = vmatprep.subr.mxu0 0.0
  %238 = vmatpush1.msra.mxu0 0.0
  %239 = vmatprep.subr.mxu0 0.0
  %240 = vmatpush1.msra.mxu0 0.0
  %241 = vmatprep.subr.mxu0 0.0
  %242 = vmatpush1.msra.mxu0 0.0
  %243 = vmatprep.subr.mxu0 0.0
  %244 = vmatpush1.msra.mxu0 0.0
  %245 = vmatprep.subr.mxu0 0.0
  %246 = vmatpush1.msra.mxu0 0.0
  %247 = vmatprep.subr.mxu0 0.0
  %248 = vmatpush1.msra.mxu0 %v215
  %249 = vmatprep.subr.mxu0 0.0
  %250 = vmatpush2.msra.mxu0 0.0
  %251 = vmatprep.subr.mxu0 0.0
  %252 = vmatpush2.msra.mxu0 0.0
  %253 = vmatprep.subr.mxu0 0.0
  %254 = vmatpush2.msra.mxu0 0.0
  %255 = vmatprep.subr.mxu0 0.0
  %256 = vmatpush2.msra.mxu0 0.0
  %257 = vmatprep.subr.mxu0 0.0
  %258 = vmatpush2.msra.mxu0 0.0
  %259 = vmatprep.subr.mxu0 0.0
  %260 = vmatpush2.msra.mxu0 0.0
  %261 = vmatprep.subr.mxu0 0.0
  %262 = vmatpush2.msra.mxu0 0.0
  %263 = vmatprep.subr.mxu0 0.0
  %264 = vmatpush2.msra.mxu0 0.0
  %265 = vmatprep.subr.mxu0 0.0
  %266 = vmatpush2.msra.mxu0 0.0
  %267 = vmatprep.subr.mxu0 0.0
  %268 = vmatpush2.msra.mxu0 0.0
  %269 = vmatprep.subr.mxu0 0.0
  %270 = vmatpush2.msra.mxu0 0.0
  %271 = vmatprep.subr.mxu0 0.0
  %272 = vmatpush2.msra.mxu0 0.0
  %273 = vmatprep.subr.mxu0 0.0
  %274 = vmatpush2.msra.mxu0 0.0
  %275 = vmatprep.subr.mxu0 0.0
  %276 = vmatpush2.msra.mxu0 0.0
  %277 = vmatprep.subr.mxu0 0.0
  %278 = vmatpush2.msra.mxu0 0.0
  %279 = vmatprep.subr.mxu0 0.0
  %280 = vmatpush2.msra.mxu0 0.0
  %281 = vmatprep.mubr.f32.mxu0 0.0
  %282 = vmatmul.mubr.f32.gmra.mxu0 %v190
  %v283 = vpop.f32.mrf.mxu0
  %v284 = vadd.f32 0.0, %v283
  %v285 = vpop.f32.mrf.mxu0
  %286 = vmatprep.mubr.f32.mxu0 0.0
  %287 = vmatmul.mubr.f32.gmra.mxu0 %v193
  %v288 = vpop.f32.mrf.mxu0
  %v289 = vadd.f32 0.0, %v288
  %v290 = vpop.f32.mrf.mxu0
  %291 = vmatprep.mubr.f32.mxu0 0.0
  %292 = vmatmul.mubr.f32.gmra.mxu0 %v196
  %v293 = vpop.f32.mrf.mxu0
  %v294 = vadd.f32 0.0, %v293
  %v295 = vpop.f32.mrf.mxu0
  %296 = vmatprep.mubr.f32.mxu0 0.0
  %297 = vmatmul.mubr.f32.gmra.mxu0 %v199
  %v298 = vpop.f32.mrf.mxu0
  %v299 = vadd.f32 0.0, %v298
  %v300 = vpop.f32.mrf.mxu0
  %301 = vmatprep.mubr.f32.mxu0 0.0
  %302 = vmatmul.mubr.f32.gmra.mxu0 %v202
  %v303 = vpop.f32.mrf.mxu0
  %v304 = vadd.f32 0.0, %v303
  %v305 = vpop.f32.mrf.mxu0
  %306 = vmatprep.mubr.f32.mxu0 0.0
  %307 = vmatmul.mubr.f32.gmra.mxu0 %v205
  %v308 = vpop.f32.mrf.mxu0
  %v309 = vadd.f32 0.0, %v308
  %v310 = vpop.f32.mrf.mxu0
  %311 = vmatprep.mubr.f32.mxu0 0.0
  %312 = vmatmul.mubr.f32.gmra.mxu0 %v208
  %v313 = vpop.f32.mrf.mxu0
  %v314 = vadd.f32 0.0, %v313
  %v315 = vpop.f32.mrf.mxu0
  %316 = vmatprep.mubr.f32.mxu0 0.0
  %317 = vmatmul.mubr.f32.gmra.mxu0 %v211
  %v318 = vpop.f32.mrf.mxu0
  %v319 = vadd.f32 0.0, %v318
  %v320 = vpop.f32.mrf.mxu0
  %321 = vdwg.mxu0
  %v323 = vsel %vm188, %v130, 0
  %v326 = vsel %vm188, %v131, 0
  %v329 = vsel %vm188, %v132, 0
  %v332 = vsel %vm188, %v133, 0
  %v335 = vsel %vm188, %v134, 0
  %v338 = vsel %vm188, %v135, 0
  %v341 = vsel %vm188, %v136, 0
  %v344 = vsel %vm188, %v137, 0
  %v347 = vsel %vm213, %v138, 0
  %349 = vmatprep.subr.mxu0 0.0
  %350 = vmatpush1.msra.mxu0 0.0
  %351 = vmatprep.subr.mxu0 0.0
  %352 = vmatpush1.msra.mxu0 0.0
  %353 = vmatprep.subr.mxu0 0.0
  %354 = vmatpush1.msra.mxu0 0.0
  %355 = vmatprep.subr.mxu0 0.0
  %356 = vmatpush1.msra.mxu0 0.0
  %357 = vmatprep.subr.mxu0 0.0
  %358 = vmatpush1.msra.mxu0 0.0
  %359 = vmatprep.subr.mxu0 0.0
  %360 = vmatpush1.msra.mxu0 0.0
  %361 = vmatprep.subr.mxu0 0.0
  %362 = vmatpush1.msra.mxu0 0.0
  %363 = vmatprep.subr.mxu0 0.0
  %364 = vmatpush1.msra.mxu0 0.0
  %365 = vmatprep.subr.mxu0 0.0
  %366 = vmatpush1.msra.mxu0 0.0
  %367 = vmatprep.subr.mxu0 0.0
  %368 = vmatpush1.msra.mxu0 0.0
  %369 = vmatprep.subr.mxu0 0.0
  %370 = vmatpush1.msra.mxu0 0.0
  %371 = vmatprep.subr.mxu0 0.0
  %372 = vmatpush1.msra.mxu0 0.0
  %373 = vmatprep.subr.mxu0 0.0
  %374 = vmatpush1.msra.mxu0 0.0
  %375 = vmatprep.subr.mxu0 0.0
  %376 = vmatpush1.msra.mxu0 0.0
  %377 = vmatprep.subr.mxu0 0.0
  %378 = vmatpush1.msra.mxu0 0.0
  %379 = vmatprep.subr.mxu0 0.0
  %380 = vmatpush1.msra.mxu0 %v347
  %381 = vmatprep.subr.mxu0 0.0
  %382 = vmatpush2.msra.mxu0 0.0
  %383 = vmatprep.subr.mxu0 0.0
  %384 = vmatpush2.msra.mxu0 0.0
  %385 = vmatprep.subr.mxu0 0.0
  %386 = vmatpush2.msra.mxu0 0.0
  %387 = vmatprep.subr.mxu0 0.0
  %388 = vmatpush2.msra.mxu0 0.0
  %389 = vmatprep.subr.mxu0 0.0
  %390 = vmatpush2.msra.mxu0 0.0
  %391 = vmatprep.subr.mxu0 0.0
  %392 = vmatpush2.msra.mxu0 0.0
  %393 = vmatprep.subr.mxu0 0.0
  %394 = vmatpush2.msra.mxu0 0.0
  %395 = vmatprep.subr.mxu0 0.0
  %396 = vmatpush2.msra.mxu0 0.0
  %397 = vmatprep.subr.mxu0 0.0
  %398 = vmatpush2.msra.mxu0 0.0
  %399 = vmatprep.subr.mxu0 0.0
  %400 = vmatpush2.msra.mxu0 0.0
  %401 = vmatprep.subr.mxu0 0.0
  %402 = vmatpush2.msra.mxu0 0.0
  %403 = vmatprep.subr.mxu0 0.0
  %404 = vmatpush2.msra.mxu0 0.0
  %405 = vmatprep.subr.mxu0 0.0
  %406 = vmatpush2.msra.mxu0 0.0
  %407 = vmatprep.subr.mxu0 0.0
  %408 = vmatpush2.msra.mxu0 0.0
  %409 = vmatprep.subr.mxu0 0.0
  %410 = vmatpush2.msra.mxu0 0.0
  %411 = vmatprep.subr.mxu0 0.0
  %412 = vmatpush2.msra.mxu0 0.0
  %413 = vmatprep.mubr.f32.mxu0 0.0
  %414 = vmatmul.mubr.f32.gmra.mxu0 %v323
  %v415 = vpop.f32.mrf.mxu0
  %v416 = vadd.f32 %v284, %v415
  %v417 = vpop.f32.mrf.mxu0
  %418 = vmatprep.mubr.f32.mxu0 0.0
  %419 = vmatmul.mubr.f32.gmra.mxu0 %v326
  %v420 = vpop.f32.mrf.mxu0
  %v421 = vadd.f32 %v289, %v420
  %v422 = vpop.f32.mrf.mxu0
  %423 = vmatprep.mubr.f32.mxu0 0.0
  %424 = vmatmul.mubr.f32.gmra.mxu0 %v329
  %v425 = vpop.f32.mrf.mxu0
  %v426 = vadd.f32 %v294, %v425
  %v427 = vpop.f32.mrf.mxu0
  %428 = vmatprep.mubr.f32.mxu0 0.0
  %429 = vmatmul.mubr.f32.gmra.mxu0 %v332
  %v430 = vpop.f32.mrf.mxu0
  %v431 = vadd.f32 %v299, %v430
  %v432 = vpop.f32.mrf.mxu0
  %433 = vmatprep.mubr.f32.mxu0 0.0
  %434 = vmatmul.mubr.f32.gmra.mxu0 %v335
  %v435 = vpop.f32.mrf.mxu0
  %v436 = vadd.f32 %v304, %v435
  %v437 = vpop.f32.mrf.mxu0
  %438 = vmatprep.mubr.f32.mxu0 0.0
  %439 = vmatmul.mubr.f32.gmra.mxu0 %v338
  %v440 = vpop.f32.mrf.mxu0
  %v441 = vadd.f32 %v309, %v440
  %v442 = vpop.f32.mrf.mxu0
  %443 = vmatprep.mubr.f32.mxu0 0.0
  %444 = vmatmul.mubr.f32.gmra.mxu0 %v341
  %v445 = vpop.f32.mrf.mxu0
  %v446 = vadd.f32 %v314, %v445
  %v447 = vpop.f32.mrf.mxu0
  %448 = vmatprep.mubr.f32.mxu0 0.0
  %449 = vmatmul.mubr.f32.gmra.mxu0 %v344
  %v450 = vpop.f32.mrf.mxu0
  %v451 = vadd.f32 %v319, %v450
  %v452 = vpop.f32.mrf.mxu0
  %453 = vdwg.mxu0
  %454 = vset.pattern.permute.xlu0 1
  %455 = vperm.xlu0 %454, %v114
  %v456 = vpop.permute.xlu0 %455
  %458 = vset.pattern.permute.xlu0 1
  %459 = vperm.xlu0 %458, %v115
  %v460 = vpop.permute.xlu0 %459
  %462 = vset.pattern.permute.xlu0 1
  %463 = vperm.xlu0 %462, %v116
  %v464 = vpop.permute.xlu0 %463
  %466 = vset.pattern.permute.xlu0 1
  %467 = vperm.xlu0 %466, %v117
  %v468 = vpop.permute.xlu0 %467
  %470 = vset.pattern.permute.xlu0 1
  %471 = vperm.xlu0 %470, %v118
  %v472 = vpop.permute.xlu0 %471
  %474 = vset.pattern.permute.xlu0 1
  %475 = vperm.xlu0 %474, %v119
  %v476 = vpop.permute.xlu0 %475
  %478 = vset.pattern.permute.xlu0 1
  %479 = vperm.xlu0 %478, %v120
  %v480 = vpop.permute.xlu0 %479
  %482 = vset.pattern.permute.xlu0 1
  %483 = vperm.xlu0 %482, %v121
  %v484 = vpop.permute.xlu0 %483
  %v486 = vmul.f32 %v456, %v122
  %v487 = vmul.f32 %v460, %v123
  %v488 = vmul.f32 %v464, %v124
  %v489 = vmul.f32 %v468, %v125
  %v490 = vmul.f32 %v472, %v126
  %v491 = vmul.f32 %v476, %v127
  %v492 = vmul.f32 %v480, %v128
  %v493 = vmul.f32 %v484, %v129
  %s494 = scalar_lea.vmem %s2, 4
  %v495 = vld [vmem:[%s494] sm:$0xf]
  %v497 = vsel %vm188, %v486, 0
  %v500 = vsel %vm188, %v487, 0
  %v503 = vsel %vm188, %v488, 0
  %v506 = vsel %vm188, %v489, 0
  %v509 = vsel %vm188, %v490, 0
  %v512 = vsel %vm188, %v491, 0
  %v515 = vsel %vm188, %v492, 0
  %v518 = vsel %vm188, %v493, 0
  %v521 = vsel %vm213, %v495, 0
  %523 = vmatprep.subr.mxu0 0.0
  %524 = vmatpush1.msra.mxu0 0.0
  %525 = vmatprep.subr.mxu0 0.0
  %526 = vmatpush1.msra.mxu0 0.0
  %527 = vmatprep.subr.mxu0 0.0
  %528 = vmatpush1.msra.mxu0 0.0
  %529 = vmatprep.subr.mxu0 0.0
  %530 = vmatpush1.msra.mxu0 0.0
  %531 = vmatprep.subr.mxu0 0.0
  %532 = vmatpush1.msra.mxu0 0.0
  %533 = vmatprep.subr.mxu0 0.0
  %534 = vmatpush1.msra.mxu0 0.0
  %535 = vmatprep.subr.mxu0 0.0
  %536 = vmatpush1.msra.mxu0 0.0
  %537 = vmatprep.subr.mxu0 0.0
  %538 = vmatpush1.msra.mxu0 0.0
  %539 = vmatprep.subr.mxu0 0.0
  %540 = vmatpush1.msra.mxu0 0.0
  %541 = vmatprep.subr.mxu0 0.0
  %542 = vmatpush1.msra.mxu0 0.0
  %543 = vmatprep.subr.mxu0 0.0
  %544 = vmatpush1.msra.mxu0 0.0
  %545 = vmatprep.subr.mxu0 0.0
  %546 = vmatpush1.msra.mxu0 0.0
  %547 = vmatprep.subr.mxu0 0.0
  %548 = vmatpush1.msra.mxu0 0.0
  %549 = vmatprep.subr.mxu0 0.0
  %550 = vmatpush1.msra.mxu0 0.0
  %551 = vmatprep.subr.mxu0 0.0
  %552 = vmatpush1.msra.mxu0 0.0
  %553 = vmatprep.subr.mxu0 0.0
  %554 = vmatpush1.msra.mxu0 %v521
  %555 = vmatprep.subr.mxu0 0.0
  %556 = vmatpush2.msra.mxu0 0.0
  %557 = vmatprep.subr.mxu0 0.0
  %558 = vmatpush2.msra.mxu0 0.0
  %559 = vmatprep.subr.mxu0 0.0
  %560 = vmatpush2.msra.mxu0 0.0
  %561 = vmatprep.subr.mxu0 0.0
  %562 = vmatpush2.msra.mxu0 0.0
  %563 = vmatprep.subr.mxu0 0.0
  %564 = vmatpush2.msra.mxu0 0.0
  %565 = vmatprep.subr.mxu0 0.0
  %566 = vmatpush2.msra.mxu0 0.0
  %567 = vmatprep.subr.mxu0 0.0
  %568 = vmatpush2.msra.mxu0 0.0
  %569 = vmatprep.subr.mxu0 0.0
  %570 = vmatpush2.msra.mxu0 0.0
  %571 = vmatprep.subr.mxu0 0.0
  %572 = vmatpush2.msra.mxu0 0.0
  %573 = vmatprep.subr.mxu0 0.0
  %574 = vmatpush2.msra.mxu0 0.0
  %575 = vmatprep.subr.mxu0 0.0
  %576 = vmatpush2.msra.mxu0 0.0
  %577 = vmatprep.subr.mxu0 0.0
  %578 = vmatpush2.msra.mxu0 0.0
  %579 = vmatprep.subr.mxu0 0.0
  %580 = vmatpush2.msra.mxu0 0.0
  %581 = vmatprep.subr.mxu0 0.0
  %582 = vmatpush2.msra.mxu0 0.0
  %583 = vmatprep.subr.mxu0 0.0
  %584 = vmatpush2.msra.mxu0 0.0
  %585 = vmatprep.subr.mxu0 0.0
  %586 = vmatpush2.msra.mxu0 0.0
  %587 = vmatprep.mubr.f32.mxu0 0.0
  %588 = vmatmul.mubr.f32.gmra.mxu0 %v497
  %v589 = vpop.f32.mrf.mxu0
  %v590 = vadd.f32 0.0, %v589
  %v591 = vpop.f32.mrf.mxu0
  %592 = vmatprep.mubr.f32.mxu0 0.0
  %593 = vmatmul.mubr.f32.gmra.mxu0 %v500
  %v594 = vpop.f32.mrf.mxu0
  %v595 = vadd.f32 0.0, %v594
  %v596 = vpop.f32.mrf.mxu0
  %597 = vmatprep.mubr.f32.mxu0 0.0
  %598 = vmatmul.mubr.f32.gmra.mxu0 %v503
  %v599 = vpop.f32.mrf.mxu0
  %v600 = vadd.f32 0.0, %v599
  %v601 = vpop.f32.mrf.mxu0
  %602 = vmatprep.mubr.f32.mxu0 0.0
  %603 = vmatmul.mubr.f32.gmra.mxu0 %v506
  %v604 = vpop.f32.mrf.mxu0
  %v605 = vadd.f32 0.0, %v604
  %v606 = vpop.f32.mrf.mxu0
  %607 = vmatprep.mubr.f32.mxu0 0.0
  %608 = vmatmul.mubr.f32.gmra.mxu0 %v509
  %v609 = vpop.f32.mrf.mxu0
  %v610 = vadd.f32 0.0, %v609
  %v611 = vpop.f32.mrf.mxu0
  %612 = vmatprep.mubr.f32.mxu0 0.0
  %613 = vmatmul.mubr.f32.gmra.mxu0 %v512
  %v614 = vpop.f32.mrf.mxu0
  %v615 = vadd.f32 0.0, %v614
  %v616 = vpop.f32.mrf.mxu0
  %617 = vmatprep.mubr.f32.mxu0 0.0
  %618 = vmatmul.mubr.f32.gmra.mxu0 %v515
  %v619 = vpop.f32.mrf.mxu0
  %v620 = vadd.f32 0.0, %v619
  %v621 = vpop.f32.mrf.mxu0
  %622 = vmatprep.mubr.f32.mxu0 0.0
  %623 = vmatmul.mubr.f32.gmra.mxu0 %v518
  %v624 = vpop.f32.mrf.mxu0
  %v625 = vadd.f32 0.0, %v624
  %v626 = vpop.f32.mrf.mxu0
  %627 = vdwg.mxu0
  %v628 = vadd.f32 %v416, %v590
  %v629 = vadd.f32 %v421, %v595
  %v630 = vadd.f32 %v426, %v600
  %v631 = vadd.f32 %v431, %v605
  %v632 = vadd.f32 %v436, %v610
  %v633 = vadd.f32 %v441, %v615
  %v634 = vadd.f32 %v446, %v620
  %v635 = vadd.f32 %v451, %v625
  %636 = vset.pattern.permute.xlu0 2
  %637 = vperm.xlu0 %636, %v114
  %v638 = vpop.permute.xlu0 %637
  %640 = vset.pattern.permute.xlu0 2
  %641 = vperm.xlu0 %640, %v115
  %v642 = vpop.permute.xlu0 %641
  %644 = vset.pattern.permute.xlu0 2
  %645 = vperm.xlu0 %644, %v116
  %v646 = vpop.permute.xlu0 %645
  %648 = vset.pattern.permute.xlu0 2
  %649 = vperm.xlu0 %648, %v117
  %v650 = vpop.permute.xlu0 %649
  %652 = vset.pattern.permute.xlu0 2
  %653 = vperm.xlu0 %652, %v118
  %v654 = vpop.permute.xlu0 %653
  %656 = vset.pattern.permute.xlu0 2
  %657 = vperm.xlu0 %656, %v119
  %v658 = vpop.permute.xlu0 %657
  %660 = vset.pattern.permute.xlu0 2
  %661 = vperm.xlu0 %660, %v120
  %v662 = vpop.permute.xlu0 %661
  %664 = vset.pattern.permute.xlu0 2
  %665 = vperm.xlu0 %664, %v121
  %v666 = vpop.permute.xlu0 %665
  %v668 = vmul.f32 %v638, %v122
  %v669 = vmul.f32 %v642, %v123
  %v670 = vmul.f32 %v646, %v124
  %v671 = vmul.f32 %v650, %v125
  %v672 = vmul.f32 %v654, %v126
  %v673 = vmul.f32 %v658, %v127
  %v674 = vmul.f32 %v662, %v128
  %v675 = vmul.f32 %v666, %v129
  %s676 = scalar_lea.vmem %s2, 8
  %v677 = vld [vmem:[%s676] sm:$0xf]
  %v679 = vsel %vm188, %v668, 0
  %v682 = vsel %vm188, %v669, 0
  %v685 = vsel %vm188, %v670, 0
  %v688 = vsel %vm188, %v671, 0
  %v691 = vsel %vm188, %v672, 0
  %v694 = vsel %vm188, %v673, 0
  %v697 = vsel %vm188, %v674, 0
  %v700 = vsel %vm188, %v675, 0
  %v703 = vsel %vm213, %v677, 0
  %705 = vmatprep.subr.mxu0 0.0
  %706 = vmatpush1.msra.mxu0 0.0
  %707 = vmatprep.subr.mxu0 0.0
  %708 = vmatpush1.msra.mxu0 0.0
  %709 = vmatprep.subr.mxu0 0.0
  %710 = vmatpush1.msra.mxu0 0.0
  %711 = vmatprep.subr.mxu0 0.0
  %712 = vmatpush1.msra.mxu0 0.0
  %713 = vmatprep.subr.mxu0 0.0
  %714 = vmatpush1.msra.mxu0 0.0
  %715 = vmatprep.subr.mxu0 0.0
  %716 = vmatpush1.msra.mxu0 0.0
  %717 = vmatprep.subr.mxu0 0.0
  %718 = vmatpush1.msra.mxu0 0.0
  %719 = vmatprep.subr.mxu0 0.0
  %720 = vmatpush1.msra.mxu0 0.0
  %721 = vmatprep.subr.mxu0 0.0
  %722 = vmatpush1.msra.mxu0 0.0
  %723 = vmatprep.subr.mxu0 0.0
  %724 = vmatpush1.msra.mxu0 0.0
  %725 = vmatprep.subr.mxu0 0.0
  %726 = vmatpush1.msra.mxu0 0.0
  %727 = vmatprep.subr.mxu0 0.0
  %728 = vmatpush1.msra.mxu0 0.0
  %729 = vmatprep.subr.mxu0 0.0
  %730 = vmatpush1.msra.mxu0 0.0
  %731 = vmatprep.subr.mxu0 0.0
  %732 = vmatpush1.msra.mxu0 0.0
  %733 = vmatprep.subr.mxu0 0.0
  %734 = vmatpush1.msra.mxu0 0.0
  %735 = vmatprep.subr.mxu0 0.0
  %736 = vmatpush1.msra.mxu0 %v703
  %737 = vmatprep.subr.mxu0 0.0
  %738 = vmatpush2.msra.mxu0 0.0
  %739 = vmatprep.subr.mxu0 0.0
  %740 = vmatpush2.msra.mxu0 0.0
  %741 = vmatprep.subr.mxu0 0.0
  %742 = vmatpush2.msra.mxu0 0.0
  %743 = vmatprep.subr.mxu0 0.0
  %744 = vmatpush2.msra.mxu0 0.0
  %745 = vmatprep.subr.mxu0 0.0
  %746 = vmatpush2.msra.mxu0 0.0
  %747 = vmatprep.subr.mxu0 0.0
  %748 = vmatpush2.msra.mxu0 0.0
  %749 = vmatprep.subr.mxu0 0.0
  %750 = vmatpush2.msra.mxu0 0.0
  %751 = vmatprep.subr.mxu0 0.0
  %752 = vmatpush2.msra.mxu0 0.0
  %753 = vmatprep.subr.mxu0 0.0
  %754 = vmatpush2.msra.mxu0 0.0
  %755 = vmatprep.subr.mxu0 0.0
  %756 = vmatpush2.msra.mxu0 0.0
  %757 = vmatprep.subr.mxu0 0.0
  %758 = vmatpush2.msra.mxu0 0.0
  %759 = vmatprep.subr.mxu0 0.0
  %760 = vmatpush2.msra.mxu0 0.0
  %761 = vmatprep.subr.mxu0 0.0
  %762 = vmatpush2.msra.mxu0 0.0
  %763 = vmatprep.subr.mxu0 0.0
  %764 = vmatpush2.msra.mxu0 0.0
  %765 = vmatprep.subr.mxu0 0.0
  %766 = vmatpush2.msra.mxu0 0.0
  %767 = vmatprep.subr.mxu0 0.0
  %768 = vmatpush2.msra.mxu0 0.0
  %769 = vmatprep.mubr.f32.mxu0 0.0
  %770 = vmatmul.mubr.f32.gmra.mxu0 %v679
  %v771 = vpop.f32.mrf.mxu0
  %v772 = vadd.f32 0.0, %v771
  %v773 = vpop.f32.mrf.mxu0
  %774 = vmatprep.mubr.f32.mxu0 0.0
  %775 = vmatmul.mubr.f32.gmra.mxu0 %v682
  %v776 = vpop.f32.mrf.mxu0
  %v777 = vadd.f32 0.0, %v776
  %v778 = vpop.f32.mrf.mxu0
  %779 = vmatprep.mubr.f32.mxu0 0.0
  %780 = vmatmul.mubr.f32.gmra.mxu0 %v685
  %v781 = vpop.f32.mrf.mxu0
  %v782 = vadd.f32 0.0, %v781
  %v783 = vpop.f32.mrf.mxu0
  %784 = vmatprep.mubr.f32.mxu0 0.0
  %785 = vmatmul.mubr.f32.gmra.mxu0 %v688
  %v786 = vpop.f32.mrf.mxu0
  %v787 = vadd.f32 0.0, %v786
  %v788 = vpop.f32.mrf.mxu0
  %789 = vmatprep.mubr.f32.mxu0 0.0
  %790 = vmatmul.mubr.f32.gmra.mxu0 %v691
  %v791 = vpop.f32.mrf.mxu0
  %v792 = vadd.f32 0.0, %v791
  %v793 = vpop.f32.mrf.mxu0
  %794 = vmatprep.mubr.f32.mxu0 0.0
  %795 = vmatmul.mubr.f32.gmra.mxu0 %v694
  %v796 = vpop.f32.mrf.mxu0
  %v797 = vadd.f32 0.0, %v796
  %v798 = vpop.f32.mrf.mxu0
  %799 = vmatprep.mubr.f32.mxu0 0.0
  %800 = vmatmul.mubr.f32.gmra.mxu0 %v697
  %v801 = vpop.f32.mrf.mxu0
  %v802 = vadd.f32 0.0, %v801
  %v803 = vpop.f32.mrf.mxu0
  %804 = vmatprep.mubr.f32.mxu0 0.0
  %805 = vmatmul.mubr.f32.gmra.mxu0 %v700
  %v806 = vpop.f32.mrf.mxu0
  %v807 = vadd.f32 0.0, %v806
  %v808 = vpop.f32.mrf.mxu0
  %809 = vdwg.mxu0
  %v810 = vadd.f32 %v628, %v772
  %v811 = vadd.f32 %v629, %v777
  %v812 = vadd.f32 %v630, %v782
  %v813 = vadd.f32 %v631, %v787
  %v814 = vadd.f32 %v632, %v792
  %v815 = vadd.f32 %v633, %v797
  %v816 = vadd.f32 %v634, %v802
  %v817 = vadd.f32 %v635, %v807
  %818 = vset.pattern.permute.xlu0 3
  %819 = vperm.xlu0 %818, %v114
  %v820 = vpop.permute.xlu0 %819
  %822 = vset.pattern.permute.xlu0 3
  %823 = vperm.xlu0 %822, %v115
  %v824 = vpop.permute.xlu0 %823
  %826 = vset.pattern.permute.xlu0 3
  %827 = vperm.xlu0 %826, %v116
  %v828 = vpop.permute.xlu0 %827
  %830 = vset.pattern.permute.xlu0 3
  %831 = vperm.xlu0 %830, %v117
  %v832 = vpop.permute.xlu0 %831
  %834 = vset.pattern.permute.xlu0 3
  %835 = vperm.xlu0 %834, %v118
  %v836 = vpop.permute.xlu0 %835
  %838 = vset.pattern.permute.xlu0 3
  %839 = vperm.xlu0 %838, %v119
  %v840 = vpop.permute.xlu0 %839
  %842 = vset.pattern.permute.xlu0 3
  %843 = vperm.xlu0 %842, %v120
  %v844 = vpop.permute.xlu0 %843
  %846 = vset.pattern.permute.xlu0 3
  %847 = vperm.xlu0 %846, %v121
  %v848 = vpop.permute.xlu0 %847
  %v850 = vmul.f32 %v820, %v122
  %v851 = vmul.f32 %v824, %v123
  %v852 = vmul.f32 %v828, %v124
  %v853 = vmul.f32 %v832, %v125
  %v854 = vmul.f32 %v836, %v126
  %v855 = vmul.f32 %v840, %v127
  %v856 = vmul.f32 %v844, %v128
  %v857 = vmul.f32 %v848, %v129
  %s858 = scalar_lea.vmem %s2, 12
  %v859 = vld [vmem:[%s858] sm:$0xf]
  %v861 = vsel %vm188, %v850, 0
  %v864 = vsel %vm188, %v851, 0
  %v867 = vsel %vm188, %v852, 0
  %v870 = vsel %vm188, %v853, 0
  %v873 = vsel %vm188, %v854, 0
  %v876 = vsel %vm188, %v855, 0
  %v879 = vsel %vm188, %v856, 0
  %v882 = vsel %vm188, %v857, 0
  %v885 = vsel %vm213, %v859, 0
  %887 = vmatprep.subr.mxu0 0.0
  %888 = vmatpush1.msra.mxu0 0.0
  %889 = vmatprep.subr.mxu0 0.0
  %890 = vmatpush1.msra.mxu0 0.0
  %891 = vmatprep.subr.mxu0 0.0
  %892 = vmatpush1.msra.mxu0 0.0
  %893 = vmatprep.subr.mxu0 0.0
  %894 = vmatpush1.msra.mxu0 0.0
  %895 = vmatprep.subr.mxu0 0.0
  %896 = vmatpush1.msra.mxu0 0.0
  %897 = vmatprep.subr.mxu0 0.0
  %898 = vmatpush1.msra.mxu0 0.0
  %899 = vmatprep.subr.mxu0 0.0
  %900 = vmatpush1.msra.mxu0 0.0
  %901 = vmatprep.subr.mxu0 0.0
  %902 = vmatpush1.msra.mxu0 0.0
  %903 = vmatprep.subr.mxu0 0.0
  %904 = vmatpush1.msra.mxu0 0.0
  %905 = vmatprep.subr.mxu0 0.0
  %906 = vmatpush1.msra.mxu0 0.0
  %907 = vmatprep.subr.mxu0 0.0
  %908 = vmatpush1.msra.mxu0 0.0
  %909 = vmatprep.subr.mxu0 0.0
  %910 = vmatpush1.msra.mxu0 0.0
  %911 = vmatprep.subr.mxu0 0.0
  %912 = vmatpush1.msra.mxu0 0.0
  %913 = vmatprep.subr.mxu0 0.0
  %914 = vmatpush1.msra.mxu0 0.0
  %915 = vmatprep.subr.mxu0 0.0
  %916 = vmatpush1.msra.mxu0 0.0
  %917 = vmatprep.subr.mxu0 0.0
  %918 = vmatpush1.msra.mxu0 %v885
  %919 = vmatprep.subr.mxu0 0.0
  %920 = vmatpush2.msra.mxu0 0.0
  %921 = vmatprep.subr.mxu0 0.0
  %922 = vmatpush2.msra.mxu0 0.0
  %923 = vmatprep.subr.mxu0 0.0
  %924 = vmatpush2.msra.mxu0 0.0
  %925 = vmatprep.subr.mxu0 0.0
  %926 = vmatpush2.msra.mxu0 0.0
  %927 = vmatprep.subr.mxu0 0.0
  %928 = vmatpush2.msra.mxu0 0.0
  %929 = vmatprep.subr.mxu0 0.0
  %930 = vmatpush2.msra.mxu0 0.0
  %931 = vmatprep.subr.mxu0 0.0
  %932 = vmatpush2.msra.mxu0 0.0
  %933 = vmatprep.subr.mxu0 0.0
  %934 = vmatpush2.msra.mxu0 0.0
  %935 = vmatprep.subr.mxu0 0.0
  %936 = vmatpush2.msra.mxu0 0.0
  %937 = vmatprep.subr.mxu0 0.0
  %938 = vmatpush2.msra.mxu0 0.0
  %939 = vmatprep.subr.mxu0 0.0
  %940 = vmatpush2.msra.mxu0 0.0
  %941 = vmatprep.subr.mxu0 0.0
  %942 = vmatpush2.msra.mxu0 0.0
  %943 = vmatprep.subr.mxu0 0.0
  %944 = vmatpush2.msra.mxu0 0.0
  %945 = vmatprep.subr.mxu0 0.0
  %946 = vmatpush2.msra.mxu0 0.0
  %947 = vmatprep.subr.mxu0 0.0
  %948 = vmatpush2.msra.mxu0 0.0
  %949 = vmatprep.subr.mxu0 0.0
  %950 = vmatpush2.msra.mxu0 0.0
  %951 = vmatprep.mubr.f32.mxu0 0.0
  %952 = vmatmul.mubr.f32.gmra.mxu0 %v861
  %v953 = vpop.f32.mrf.mxu0
  %v954 = vadd.f32 0.0, %v953
  %v955 = vpop.f32.mrf.mxu0
  %956 = vmatprep.mubr.f32.mxu0 0.0
  %957 = vmatmul.mubr.f32.gmra.mxu0 %v864
  %v958 = vpop.f32.mrf.mxu0
  %v959 = vadd.f32 0.0, %v958
  %v960 = vpop.f32.mrf.mxu0
  %961 = vmatprep.mubr.f32.mxu0 0.0
  %962 = vmatmul.mubr.f32.gmra.mxu0 %v867
  %v963 = vpop.f32.mrf.mxu0
  %v964 = vadd.f32 0.0, %v963
  %v965 = vpop.f32.mrf.mxu0
  %966 = vmatprep.mubr.f32.mxu0 0.0
  %967 = vmatmul.mubr.f32.gmra.mxu0 %v870
  %v968 = vpop.f32.mrf.mxu0
  %v969 = vadd.f32 0.0, %v968
  %v970 = vpop.f32.mrf.mxu0
  %971 = vmatprep.mubr.f32.mxu0 0.0
  %972 = vmatmul.mubr.f32.gmra.mxu0 %v873
  %v973 = vpop.f32.mrf.mxu0
  %v974 = vadd.f32 0.0, %v973
  %v975 = vpop.f32.mrf.mxu0
  %976 = vmatprep.mubr.f32.mxu0 0.0
  %977 = vmatmul.mubr.f32.gmra.mxu0 %v876
  %v978 = vpop.f32.mrf.mxu0
  %v979 = vadd.f32 0.0, %v978
  %v980 = vpop.f32.mrf.mxu0
  %981 = vmatprep.mubr.f32.mxu0 0.0
  %982 = vmatmul.mubr.f32.gmra.mxu0 %v879
  %v983 = vpop.f32.mrf.mxu0
  %v984 = vadd.f32 0.0, %v983
  %v985 = vpop.f32.mrf.mxu0
  %986 = vmatprep.mubr.f32.mxu0 0.0
  %987 = vmatmul.mubr.f32.gmra.mxu0 %v882
  %v988 = vpop.f32.mrf.mxu0
  %v989 = vadd.f32 0.0, %v988
  %v990 = vpop.f32.mrf.mxu0
  %991 = vdwg.mxu0
  %v992 = vadd.f32 %v810, %v954
  %v993 = vadd.f32 %v811, %v959
  %v994 = vadd.f32 %v812, %v964
  %v995 = vadd.f32 %v813, %v969
  %v996 = vadd.f32 %v814, %v974
  %v997 = vadd.f32 %v815, %v979
  %v998 = vadd.f32 %v816, %v984
  %v999 = vadd.f32 %v817, %v989
  %vm1000 = vcmask 130048
  %1001 = vst.msk [vmem:[%s8] sm:$0xff] %vm1000, %v992
  %1002 = vst.msk [vmem:[%s8 + $0x8] sm:$0xff] %vm1000, %v993
  %1003 = vst.msk [vmem:[%s8 + $0x10] sm:$0xff] %vm1000, %v994
  %1004 = vst.msk [vmem:[%s8 + $0x18] sm:$0xff] %vm1000, %v995
  %1005 = vst.msk [vmem:[%s8 + $0x20] sm:$0xff] %vm1000, %v996
  %1006 = vst.msk [vmem:[%s8 + $0x28] sm:$0xff] %vm1000, %v997
  %1007 = vst.msk [vmem:[%s8 + $0x30] sm:$0xff] %vm1000, %v998
  %1008 = vst.msk [vmem:[%s8 + $0x38] sm:$0xff] %vm1000, %v999
  %v1009 = vld [vmem:[#allocation3] sm:$0xff]
  %v1010 = vld [vmem:[#allocation3 + $0x8] sm:$0xff]
  %v1011 = vld [vmem:[#allocation2] sm:$0xff]
  %v1012 = vld [vmem:[%s8] sm:$0xff]
  %v1014 = vsel %vm1000, %v1011, 0
  %1016 = vmatprep.subr.mxu0 0.0
  %1017 = vmatpush1.msra.mxu0 0.0
  %1018 = vmatprep.subr.mxu0 0.0
  %1019 = vmatpush1.msra.mxu0 0.0
  %1020 = vmatprep.subr.mxu0 0.0
  %1021 = vmatpush1.msra.mxu0 0.0
  %1022 = vmatprep.subr.mxu0 0.0
  %1023 = vmatpush1.msra.mxu0 0.0
  %1024 = vmatprep.subr.mxu0 0.0
  %1025 = vmatpush1.msra.mxu0 0.0
  %1026 = vmatprep.subr.mxu0 0.0
  %1027 = vmatpush1.msra.mxu0 0.0
  %1028 = vmatprep.subr.mxu0 0.0
  %1029 = vmatpush1.msra.mxu0 0.0
  %1030 = vmatprep.subr.mxu0 0.0
  %1031 = vmatpush1.msra.mxu0 0.0
  %1032 = vmatprep.subr.mxu0 0.0
  %1033 = vmatpush1.msra.mxu0 0.0
  %1034 = vmatprep.subr.mxu0 0.0
  %1035 = vmatpush1.msra.mxu0 0.0
  %1036 = vmatprep.subr.mxu0 0.0
  %1037 = vmatpush1.msra.mxu0 0.0
  %1038 = vmatprep.subr.mxu0 0.0
  %1039 = vmatpush1.msra.mxu0 0.0
  %1040 = vmatprep.subr.mxu0 0.0
  %1041 = vmatpush1.msra.mxu0 0.0
  %1042 = vmatprep.subr.mxu0 0.0
  %1043 = vmatpush1.msra.mxu0 0.0
  %1044 = vmatprep.subr.mxu0 0.0
  %1045 = vmatpush1.msra.mxu0 %v1010
  %1046 = vmatprep.subr.mxu0 0.0
  %1047 = vmatpush1.msra.mxu0 %v1009
  %1048 = vmatprep.subr.mxu0 0.0
  %1049 = vmatpush2.msra.mxu0 0.0
  %1050 = vmatprep.subr.mxu0 0.0
  %1051 = vmatpush2.msra.mxu0 0.0
  %1052 = vmatprep.subr.mxu0 0.0
  %1053 = vmatpush2.msra.mxu0 0.0
  %1054 = vmatprep.subr.mxu0 0.0
  %1055 = vmatpush2.msra.mxu0 0.0
  %1056 = vmatprep.subr.mxu0 0.0
  %1057 = vmatpush2.msra.mxu0 0.0
  %1058 = vmatprep.subr.mxu0 0.0
  %1059 = vmatpush2.msra.mxu0 0.0
  %1060 = vmatprep.subr.mxu0 0.0
  %1061 = vmatpush2.msra.mxu0 0.0
  %1062 = vmatprep.subr.mxu0 0.0
  %1063 = vmatpush2.msra.mxu0 0.0
  %1064 = vmatprep.subr.mxu0 0.0
  %1065 = vmatpush2.msra.mxu0 0.0
  %1066 = vmatprep.subr.mxu0 0.0
  %1067 = vmatpush2.msra.mxu0 0.0
  %1068 = vmatprep.subr.mxu0 0.0
  %1069 = vmatpush2.msra.mxu0 0.0
  %1070 = vmatprep.subr.mxu0 0.0
  %1071 = vmatpush2.msra.mxu0 0.0
  %1072 = vmatprep.subr.mxu0 0.0
  %1073 = vmatpush2.msra.mxu0 0.0
  %1074 = vmatprep.subr.mxu0 0.0
  %1075 = vmatpush2.msra.mxu0 0.0
  %1076 = vmatprep.subr.mxu0 0.0
  %1077 = vmatpush2.msra.mxu0 0.0
  %1078 = vmatprep.subr.mxu0 0.0
  %1079 = vmatpush2.msra.mxu0 0.0
  %1080 = vmatprep.mubr.f32.mxu0 0.0
  %1081 = vmatmul.mubr.f32.gmra.mxu0 %v1014
  %v1082 = vpop.f32.mrf.mxu0
  %v1083 = vadd.f32 %v1012, %v1082
  %v1084 = vpop.f32.mrf.mxu0
  %1085 = vdwg.mxu0
  %1086 = vst.msk [vmem:[%s8] sm:$0xff] %vm1000, %v1083
  %s1087 = scalar_lea.vmem %s8, 8
  %v1088 = vld [vmem:[%s1087] sm:$0xff]
  %v1090 = vsel %vm1000, %v1083, 0
  %1092 = vmatprep.subr.mxu0 0.0
  %1093 = vmatpush1.msra.mxu0 0.0
  %1094 = vmatprep.subr.mxu0 0.0
  %1095 = vmatpush1.msra.mxu0 0.0
  %1096 = vmatprep.subr.mxu0 0.0
  %1097 = vmatpush1.msra.mxu0 0.0
  %1098 = vmatprep.subr.mxu0 0.0
  %1099 = vmatpush1.msra.mxu0 0.0
  %1100 = vmatprep.subr.mxu0 0.0
  %1101 = vmatpush1.msra.mxu0 0.0
  %1102 = vmatprep.subr.mxu0 0.0
  %1103 = vmatpush1.msra.mxu0 0.0
  %1104 = vmatprep.subr.mxu0 0.0
  %1105 = vmatpush1.msra.mxu0 0.0
  %1106 = vmatprep.subr.mxu0 0.0
  %1107 = vmatpush1.msra.mxu0 0.0
  %1108 = vmatprep.subr.mxu0 0.0
  %1109 = vmatpush1.msra.mxu0 0.0
  %1110 = vmatprep.subr.mxu0 0.0
  %1111 = vmatpush1.msra.mxu0 0.0
  %1112 = vmatprep.subr.mxu0 0.0
  %1113 = vmatpush1.msra.mxu0 0.0
  %1114 = vmatprep.subr.mxu0 0.0
  %1115 = vmatpush1.msra.mxu0 0.0
  %1116 = vmatprep.subr.mxu0 0.0
  %1117 = vmatpush1.msra.mxu0 0.0
  %1118 = vmatprep.subr.mxu0 0.0
  %1119 = vmatpush1.msra.mxu0 0.0
  %1120 = vmatprep.subr.mxu0 0.0
  %1121 = vmatpush1.msra.mxu0 %v1010
  %1122 = vmatprep.subr.mxu0 0.0
  %1123 = vmatpush1.msra.mxu0 %v1009
  %1124 = vmatprep.subr.mxu0 0.0
  %1125 = vmatpush2.msra.mxu0 0.0
  %1126 = vmatprep.subr.mxu0 0.0
  %1127 = vmatpush2.msra.mxu0 0.0
  %1128 = vmatprep.subr.mxu0 0.0
  %1129 = vmatpush2.msra.mxu0 0.0
  %1130 = vmatprep.subr.mxu0 0.0
  %1131 = vmatpush2.msra.mxu0 0.0
  %1132 = vmatprep.subr.mxu0 0.0
  %1133 = vmatpush2.msra.mxu0 0.0
  %1134 = vmatprep.subr.mxu0 0.0
  %1135 = vmatpush2.msra.mxu0 0.0
  %1136 = vmatprep.subr.mxu0 0.0
  %1137 = vmatpush2.msra.mxu0 0.0
  %1138 = vmatprep.subr.mxu0 0.0
  %1139 = vmatpush2.msra.mxu0 0.0
  %1140 = vmatprep.subr.mxu0 0.0
  %1141 = vmatpush2.msra.mxu0 0.0
  %1142 = vmatprep.subr.mxu0 0.0
  %1143 = vmatpush2.msra.mxu0 0.0
  %1144 = vmatprep.subr.mxu0 0.0
  %1145 = vmatpush2.msra.mxu0 0.0
  %1146 = vmatprep.subr.mxu0 0.0
  %1147 = vmatpush2.msra.mxu0 0.0
  %1148 = vmatprep.subr.mxu0 0.0
  %1149 = vmatpush2.msra.mxu0 0.0
  %1150 = vmatprep.subr.mxu0 0.0
  %1151 = vmatpush2.msra.mxu0 0.0
  %1152 = vmatprep.subr.mxu0 0.0
  %1153 = vmatpush2.msra.mxu0 0.0
  %1154 = vmatprep.subr.mxu0 0.0
  %1155 = vmatpush2.msra.mxu0 0.0
  %1156 = vmatprep.mubr.f32.mxu0 0.0
  %1157 = vmatmul.mubr.f32.gmra.mxu0 %v1090
  %v1158 = vpop.f32.mrf.mxu0
  %v1159 = vadd.f32 %v1088, %v1158
  %v1160 = vpop.f32.mrf.mxu0
  %1161 = vdwg.mxu0
  %1162 = vst.msk [vmem:[%s1087] sm:$0xff] %vm1000, %v1159
  %s1163 = scalar_lea.vmem %s8, 16
  %v1164 = vld [vmem:[%s1163] sm:$0xff]
  %v1166 = vsel %vm1000, %v1159, 0
  %1168 = vmatprep.subr.mxu0 0.0
  %1169 = vmatpush1.msra.mxu0 0.0
  %1170 = vmatprep.subr.mxu0 0.0
  %1171 = vmatpush1.msra.mxu0 0.0
  %1172 = vmatprep.subr.mxu0 0.0
  %1173 = vmatpush1.msra.mxu0 0.0
  %1174 = vmatprep.subr.mxu0 0.0
  %1175 = vmatpush1.msra.mxu0 0.0
  %1176 = vmatprep.subr.mxu0 0.0
  %1177 = vmatpush1.msra.mxu0 0.0
  %1178 = vmatprep.subr.mxu0 0.0
  %1179 = vmatpush1.msra.mxu0 0.0
  %1180 = vmatprep.subr.mxu0 0.0
  %1181 = vmatpush1.msra.mxu0 0.0
  %1182 = vmatprep.subr.mxu0 0.0
  %1183 = vmatpush1.msra.mxu0 0.0
  %1184 = vmatprep.subr.mxu0 0.0
  %1185 = vmatpush1.msra.mxu0 0.0
  %1186 = vmatprep.subr.mxu0 0.0
  %1187 = vmatpush1.msra.mxu0 0.0
  %1188 = vmatprep.subr.mxu0 0.0
  %1189 = vmatpush1.msra.mxu0 0.0
  %1190 = vmatprep.subr.mxu0 0.0
  %1191 = vmatpush1.msra.mxu0 0.0
  %1192 = vmatprep.subr.mxu0 0.0
  %1193 = vmatpush1.msra.mxu0 0.0
  %1194 = vmatprep.subr.mxu0 0.0
  %1195 = vmatpush1.msra.mxu0 0.0
  %1196 = vmatprep.subr.mxu0 0.0
  %1197 = vmatpush1.msra.mxu0 %v1010
  %1198 = vmatprep.subr.mxu0 0.0
  %1199 = vmatpush1.msra.mxu0 %v1009
  %1200 = vmatprep.subr.mxu0 0.0
  %1201 = vmatpush2.msra.mxu0 0.0
  %1202 = vmatprep.subr.mxu0 0.0
  %1203 = vmatpush2.msra.mxu0 0.0
  %1204 = vmatprep.subr.mxu0 0.0
  %1205 = vmatpush2.msra.mxu0 0.0
  %1206 = vmatprep.subr.mxu0 0.0
  %1207 = vmatpush2.msra.mxu0 0.0
  %1208 = vmatprep.subr.mxu0 0.0
  %1209 = vmatpush2.msra.mxu0 0.0
  %1210 = vmatprep.subr.mxu0 0.0
  %1211 = vmatpush2.msra.mxu0 0.0
  %1212 = vmatprep.subr.mxu0 0.0
  %1213 = vmatpush2.msra.mxu0 0.0
  %1214 = vmatprep.subr.mxu0 0.0
  %1215 = vmatpush2.msra.mxu0 0.0
  %1216 = vmatprep.subr.mxu0 0.0
  %1217 = vmatpush2.msra.mxu0 0.0
  %1218 = vmatprep.subr.mxu0 0.0
  %1219 = vmatpush2.msra.mxu0 0.0
  %1220 = vmatprep.subr.mxu0 0.0
  %1221 = vmatpush2.msra.mxu0 0.0
  %1222 = vmatprep.subr.mxu0 0.0
  %1223 = vmatpush2.msra.mxu0 0.0
  %1224 = vmatprep.subr.mxu0 0.0
  %1225 = vmatpush2.msra.mxu0 0.0
  %1226 = vmatprep.subr.mxu0 0.0
  %1227 = vmatpush2.msra.mxu0 0.0
  %1228 = vmatprep.subr.mxu0 0.0
  %1229 = vmatpush2.msra.mxu0 0.0
  %1230 = vmatprep.subr.mxu0 0.0
  %1231 = vmatpush2.msra.mxu0 0.0
  %1232 = vmatprep.mubr.f32.mxu0 0.0
  %1233 = vmatmul.mubr.f32.gmra.mxu0 %v1166
  %v1234 = vpop.f32.mrf.mxu0
  %v1235 = vadd.f32 %v1164, %v1234
  %v1236 = vpop.f32.mrf.mxu0
  %1237 = vdwg.mxu0
  %1238 = vst.msk [vmem:[%s1163] sm:$0xff] %vm1000, %v1235
  %s1239 = scalar_lea.vmem %s8, 24
  %v1240 = vld [vmem:[%s1239] sm:$0xff]
  %v1242 = vsel %vm1000, %v1235, 0
  %1244 = vmatprep.subr.mxu0 0.0
  %1245 = vmatpush1.msra.mxu0 0.0
  %1246 = vmatprep.subr.mxu0 0.0
  %1247 = vmatpush1.msra.mxu0 0.0
  %1248 = vmatprep.subr.mxu0 0.0
  %1249 = vmatpush1.msra.mxu0 0.0
  %1250 = vmatprep.subr.mxu0 0.0
  %1251 = vmatpush1.msra.mxu0 0.0
  %1252 = vmatprep.subr.mxu0 0.0
  %1253 = vmatpush1.msra.mxu0 0.0
  %1254 = vmatprep.subr.mxu0 0.0
  %1255 = vmatpush1.msra.mxu0 0.0
  %1256 = vmatprep.subr.mxu0 0.0
  %1257 = vmatpush1.msra.mxu0 0.0
  %1258 = vmatprep.subr.mxu0 0.0
  %1259 = vmatpush1.msra.mxu0 0.0
  %1260 = vmatprep.subr.mxu0 0.0
  %1261 = vmatpush1.msra.mxu0 0.0
  %1262 = vmatprep.subr.mxu0 0.0
  %1263 = vmatpush1.msra.mxu0 0.0
  %1264 = vmatprep.subr.mxu0 0.0
  %1265 = vmatpush1.msra.mxu0 0.0
  %1266 = vmatprep.subr.mxu0 0.0
  %1267 = vmatpush1.msra.mxu0 0.0
  %1268 = vmatprep.subr.mxu0 0.0
  %1269 = vmatpush1.msra.mxu0 0.0
  %1270 = vmatprep.subr.mxu0 0.0
  %1271 = vmatpush1.msra.mxu0 0.0
  %1272 = vmatprep.subr.mxu0 0.0
  %1273 = vmatpush1.msra.mxu0 %v1010
  %1274 = vmatprep.subr.mxu0 0.0
  %1275 = vmatpush1.msra.mxu0 %v1009
  %1276 = vmatprep.subr.mxu0 0.0
  %1277 = vmatpush2.msra.mxu0 0.0
  %1278 = vmatprep.subr.mxu0 0.0
  %1279 = vmatpush2.msra.mxu0 0.0
  %1280 = vmatprep.subr.mxu0 0.0
  %1281 = vmatpush2.msra.mxu0 0.0
  %1282 = vmatprep.subr.mxu0 0.0
  %1283 = vmatpush2.msra.mxu0 0.0
  %1284 = vmatprep.subr.mxu0 0.0
  %1285 = vmatpush2.msra.mxu0 0.0
  %1286 = vmatprep.subr.mxu0 0.0
  %1287 = vmatpush2.msra.mxu0 0.0
  %1288 = vmatprep.subr.mxu0 0.0
  %1289 = vmatpush2.msra.mxu0 0.0
  %1290 = vmatprep.subr.mxu0 0.0
  %1291 = vmatpush2.msra.mxu0 0.0
  %1292 = vmatprep.subr.mxu0 0.0
  %1293 = vmatpush2.msra.mxu0 0.0
  %1294 = vmatprep.subr.mxu0 0.0
  %1295 = vmatpush2.msra.mxu0 0.0
  %1296 = vmatprep.subr.mxu0 0.0
  %1297 = vmatpush2.msra.mxu0 0.0
  %1298 = vmatprep.subr.mxu0 0.0
  %1299 = vmatpush2.msra.mxu0 0.0
  %1300 = vmatprep.subr.mxu0 0.0
  %1301 = vmatpush2.msra.mxu0 0.0
  %1302 = vmatprep.subr.mxu0 0.0
  %1303 = vmatpush2.msra.mxu0 0.0
  %1304 = vmatprep.subr.mxu0 0.0
  %1305 = vmatpush2.msra.mxu0 0.0
  %1306 = vmatprep.subr.mxu0 0.0
  %1307 = vmatpush2.msra.mxu0 0.0
  %1308 = vmatprep.mubr.f32.mxu0 0.0
  %1309 = vmatmul.mubr.f32.gmra.mxu0 %v1242
  %v1310 = vpop.f32.mrf.mxu0
  %v1311 = vadd.f32 %v1240, %v1310
  %v1312 = vpop.f32.mrf.mxu0
  %1313 = vdwg.mxu0
  %1314 = vst.msk [vmem:[%s1239] sm:$0xff] %vm1000, %v1311
  %s1315 = scalar_lea.vmem %s8, 32
  %v1316 = vld [vmem:[%s1315] sm:$0xff]
  %v1318 = vsel %vm1000, %v1311, 0
  %1320 = vmatprep.subr.mxu0 0.0
  %1321 = vmatpush1.msra.mxu0 0.0
  %1322 = vmatprep.subr.mxu0 0.0
  %1323 = vmatpush1.msra.mxu0 0.0
  %1324 = vmatprep.subr.mxu0 0.0
  %1325 = vmatpush1.msra.mxu0 0.0
  %1326 = vmatprep.subr.mxu0 0.0
  %1327 = vmatpush1.msra.mxu0 0.0
  %1328 = vmatprep.subr.mxu0 0.0
  %1329 = vmatpush1.msra.mxu0 0.0
  %1330 = vmatprep.subr.mxu0 0.0
  %1331 = vmatpush1.msra.mxu0 0.0
  %1332 = vmatprep.subr.mxu0 0.0
  %1333 = vmatpush1.msra.mxu0 0.0
  %1334 = vmatprep.subr.mxu0 0.0
  %1335 = vmatpush1.msra.mxu0 0.0
  %1336 = vmatprep.subr.mxu0 0.0
  %1337 = vmatpush1.msra.mxu0 0.0
  %1338 = vmatprep.subr.mxu0 0.0
  %1339 = vmatpush1.msra.mxu0 0.0
  %1340 = vmatprep.subr.mxu0 0.0
  %1341 = vmatpush1.msra.mxu0 0.0
  %1342 = vmatprep.subr.mxu0 0.0
  %1343 = vmatpush1.msra.mxu0 0.0
  %1344 = vmatprep.subr.mxu0 0.0
  %1345 = vmatpush1.msra.mxu0 0.0
  %1346 = vmatprep.subr.mxu0 0.0
  %1347 = vmatpush1.msra.mxu0 0.0
  %1348 = vmatprep.subr.mxu0 0.0
  %1349 = vmatpush1.msra.mxu0 %v1010
  %1350 = vmatprep.subr.mxu0 0.0
  %1351 = vmatpush1.msra.mxu0 %v1009
  %1352 = vmatprep.subr.mxu0 0.0
  %1353 = vmatpush2.msra.mxu0 0.0
  %1354 = vmatprep.subr.mxu0 0.0
  %1355 = vmatpush2.msra.mxu0 0.0
  %1356 = vmatprep.subr.mxu0 0.0
  %1357 = vmatpush2.msra.mxu0 0.0
  %1358 = vmatprep.subr.mxu0 0.0
  %1359 = vmatpush2.msra.mxu0 0.0
  %1360 = vmatprep.subr.mxu0 0.0
  %1361 = vmatpush2.msra.mxu0 0.0
  %1362 = vmatprep.subr.mxu0 0.0
  %1363 = vmatpush2.msra.mxu0 0.0
  %1364 = vmatprep.subr.mxu0 0.0
  %1365 = vmatpush2.msra.mxu0 0.0
  %1366 = vmatprep.subr.mxu0 0.0
  %1367 = vmatpush2.msra.mxu0 0.0
  %1368 = vmatprep.subr.mxu0 0.0
  %1369 = vmatpush2.msra.mxu0 0.0
  %1370 = vmatprep.subr.mxu0 0.0
  %1371 = vmatpush2.msra.mxu0 0.0
  %1372 = vmatprep.subr.mxu0 0.0
  %1373 = vmatpush2.msra.mxu0 0.0
  %1374 = vmatprep.subr.mxu0 0.0
  %1375 = vmatpush2.msra.mxu0 0.0
  %1376 = vmatprep.subr.mxu0 0.0
  %1377 = vmatpush2.msra.mxu0 0.0
  %1378 = vmatprep.subr.mxu0 0.0
  %1379 = vmatpush2.msra.mxu0 0.0
  %1380 = vmatprep.subr.mxu0 0.0
  %1381 = vmatpush2.msra.mxu0 0.0
  %1382 = vmatprep.subr.mxu0 0.0
  %1383 = vmatpush2.msra.mxu0 0.0
  %1384 = vmatprep.mubr.f32.mxu0 0.0
  %1385 = vmatmul.mubr.f32.gmra.mxu0 %v1318
  %v1386 = vpop.f32.mrf.mxu0
  %v1387 = vadd.f32 %v1316, %v1386
  %v1388 = vpop.f32.mrf.mxu0
  %1389 = vdwg.mxu0
  %1390 = vst.msk [vmem:[%s1315] sm:$0xff] %vm1000, %v1387
  %s1391 = scalar_lea.vmem %s8, 40
  %v1392 = vld [vmem:[%s1391] sm:$0xff]
  %v1394 = vsel %vm1000, %v1387, 0
  %1396 = vmatprep.subr.mxu0 0.0
  %1397 = vmatpush1.msra.mxu0 0.0
  %1398 = vmatprep.subr.mxu0 0.0
  %1399 = vmatpush1.msra.mxu0 0.0
  %1400 = vmatprep.subr.mxu0 0.0
  %1401 = vmatpush1.msra.mxu0 0.0
  %1402 = vmatprep.subr.mxu0 0.0
  %1403 = vmatpush1.msra.mxu0 0.0
  %1404 = vmatprep.subr.mxu0 0.0
  %1405 = vmatpush1.msra.mxu0 0.0
  %1406 = vmatprep.subr.mxu0 0.0
  %1407 = vmatpush1.msra.mxu0 0.0
  %1408 = vmatprep.subr.mxu0 0.0
  %1409 = vmatpush1.msra.mxu0 0.0
  %1410 = vmatprep.subr.mxu0 0.0
  %1411 = vmatpush1.msra.mxu0 0.0
  %1412 = vmatprep.subr.mxu0 0.0
  %1413 = vmatpush1.msra.mxu0 0.0
  %1414 = vmatprep.subr.mxu0 0.0
  %1415 = vmatpush1.msra.mxu0 0.0
  %1416 = vmatprep.subr.mxu0 0.0
  %1417 = vmatpush1.msra.mxu0 0.0
  %1418 = vmatprep.subr.mxu0 0.0
  %1419 = vmatpush1.msra.mxu0 0.0
  %1420 = vmatprep.subr.mxu0 0.0
  %1421 = vmatpush1.msra.mxu0 0.0
  %1422 = vmatprep.subr.mxu0 0.0
  %1423 = vmatpush1.msra.mxu0 0.0
  %1424 = vmatprep.subr.mxu0 0.0
  %1425 = vmatpush1.msra.mxu0 %v1010
  %1426 = vmatprep.subr.mxu0 0.0
  %1427 = vmatpush1.msra.mxu0 %v1009
  %1428 = vmatprep.subr.mxu0 0.0
  %1429 = vmatpush2.msra.mxu0 0.0
  %1430 = vmatprep.subr.mxu0 0.0
  %1431 = vmatpush2.msra.mxu0 0.0
  %1432 = vmatprep.subr.mxu0 0.0
  %1433 = vmatpush2.msra.mxu0 0.0
  %1434 = vmatprep.subr.mxu0 0.0
  %1435 = vmatpush2.msra.mxu0 0.0
  %1436 = vmatprep.subr.mxu0 0.0
  %1437 = vmatpush2.msra.mxu0 0.0
  %1438 = vmatprep.subr.mxu0 0.0
  %1439 = vmatpush2.msra.mxu0 0.0
  %1440 = vmatprep.subr.mxu0 0.0
  %1441 = vmatpush2.msra.mxu0 0.0
  %1442 = vmatprep.subr.mxu0 0.0
  %1443 = vmatpush2.msra.mxu0 0.0
  %1444 = vmatprep.subr.mxu0 0.0
  %1445 = vmatpush2.msra.mxu0 0.0
  %1446 = vmatprep.subr.mxu0 0.0
  %1447 = vmatpush2.msra.mxu0 0.0
  %1448 = vmatprep.subr.mxu0 0.0
  %1449 = vmatpush2.msra.mxu0 0.0
  %1450 = vmatprep.subr.mxu0 0.0
  %1451 = vmatpush2.msra.mxu0 0.0
  %1452 = vmatprep.subr.mxu0 0.0
  %1453 = vmatpush2.msra.mxu0 0.0
  %1454 = vmatprep.subr.mxu0 0.0
  %1455 = vmatpush2.msra.mxu0 0.0
  %1456 = vmatprep.subr.mxu0 0.0
  %1457 = vmatpush2.msra.mxu0 0.0
  %1458 = vmatprep.subr.mxu0 0.0
  %1459 = vmatpush2.msra.mxu0 0.0
  %1460 = vmatprep.mubr.f32.mxu0 0.0
  %1461 = vmatmul.mubr.f32.gmra.mxu0 %v1394
  %v1462 = vpop.f32.mrf.mxu0
  %v1463 = vadd.f32 %v1392, %v1462
  %v1464 = vpop.f32.mrf.mxu0
  %1465 = vdwg.mxu0
  %1466 = vst.msk [vmem:[%s1391] sm:$0xff] %vm1000, %v1463
  %s1467 = scalar_lea.vmem %s8, 48
  %v1468 = vld [vmem:[%s1467] sm:$0xff]
  %v1470 = vsel %vm1000, %v1463, 0
  %1472 = vmatprep.subr.mxu0 0.0
  %1473 = vmatpush1.msra.mxu0 0.0
  %1474 = vmatprep.subr.mxu0 0.0
  %1475 = vmatpush1.msra.mxu0 0.0
  %1476 = vmatprep.subr.mxu0 0.0
  %1477 = vmatpush1.msra.mxu0 0.0
  %1478 = vmatprep.subr.mxu0 0.0
  %1479 = vmatpush1.msra.mxu0 0.0
  %1480 = vmatprep.subr.mxu0 0.0
  %1481 = vmatpush1.msra.mxu0 0.0
  %1482 = vmatprep.subr.mxu0 0.0
  %1483 = vmatpush1.msra.mxu0 0.0
  %1484 = vmatprep.subr.mxu0 0.0
  %1485 = vmatpush1.msra.mxu0 0.0
  %1486 = vmatprep.subr.mxu0 0.0
  %1487 = vmatpush1.msra.mxu0 0.0
  %1488 = vmatprep.subr.mxu0 0.0
  %1489 = vmatpush1.msra.mxu0 0.0
  %1490 = vmatprep.subr.mxu0 0.0
  %1491 = vmatpush1.msra.mxu0 0.0
  %1492 = vmatprep.subr.mxu0 0.0
  %1493 = vmatpush1.msra.mxu0 0.0
  %1494 = vmatprep.subr.mxu0 0.0
  %1495 = vmatpush1.msra.mxu0 0.0
  %1496 = vmatprep.subr.mxu0 0.0
  %1497 = vmatpush1.msra.mxu0 0.0
  %1498 = vmatprep.subr.mxu0 0.0
  %1499 = vmatpush1.msra.mxu0 0.0
  %1500 = vmatprep.subr.mxu0 0.0
  %1501 = vmatpush1.msra.mxu0 %v1010
  %1502 = vmatprep.subr.mxu0 0.0
  %1503 = vmatpush1.msra.mxu0 %v1009
  %1504 = vmatprep.subr.mxu0 0.0
  %1505 = vmatpush2.msra.mxu0 0.0
  %1506 = vmatprep.subr.mxu0 0.0
  %1507 = vmatpush2.msra.mxu0 0.0
  %1508 = vmatprep.subr.mxu0 0.0
  %1509 = vmatpush2.msra.mxu0 0.0
  %1510 = vmatprep.subr.mxu0 0.0
  %1511 = vmatpush2.msra.mxu0 0.0
  %1512 = vmatprep.subr.mxu0 0.0
  %1513 = vmatpush2.msra.mxu0 0.0
  %1514 = vmatprep.subr.mxu0 0.0
  %1515 = vmatpush2.msra.mxu0 0.0
  %1516 = vmatprep.subr.mxu0 0.0
  %1517 = vmatpush2.msra.mxu0 0.0
  %1518 = vmatprep.subr.mxu0 0.0
  %1519 = vmatpush2.msra.mxu0 0.0
  %1520 = vmatprep.subr.mxu0 0.0
  %1521 = vmatpush2.msra.mxu0 0.0
  %1522 = vmatprep.subr.mxu0 0.0
  %1523 = vmatpush2.msra.mxu0 0.0
  %1524 = vmatprep.subr.mxu0 0.0
  %1525 = vmatpush2.msra.mxu0 0.0
  %1526 = vmatprep.subr.mxu0 0.0
  %1527 = vmatpush2.msra.mxu0 0.0
  %1528 = vmatprep.subr.mxu0 0.0
  %1529 = vmatpush2.msra.mxu0 0.0
  %1530 = vmatprep.subr.mxu0 0.0
  %1531 = vmatpush2.msra.mxu0 0.0
  %1532 = vmatprep.subr.mxu0 0.0
  %1533 = vmatpush2.msra.mxu0 0.0
  %1534 = vmatprep.subr.mxu0 0.0
  %1535 = vmatpush2.msra.mxu0 0.0
  %1536 = vmatprep.mubr.f32.mxu0 0.0
  %1537 = vmatmul.mubr.f32.gmra.mxu0 %v1470
  %v1538 = vpop.f32.mrf.mxu0
  %v1539 = vadd.f32 %v1468, %v1538
  %v1540 = vpop.f32.mrf.mxu0
  %1541 = vdwg.mxu0
  %1542 = vst.msk [vmem:[%s1467] sm:$0xff] %vm1000, %v1539
  %s1543 = scalar_lea.vmem %s8, 56
  %v1544 = vld [vmem:[%s1543] sm:$0xff]
  %v1546 = vsel %vm1000, %v1539, 0
  %1548 = vmatprep.subr.mxu0 0.0
  %1549 = vmatpush1.msra.mxu0 0.0
  %1550 = vmatprep.subr.mxu0 0.0
  %1551 = vmatpush1.msra.mxu0 0.0
  %1552 = vmatprep.subr.mxu0 0.0
  %1553 = vmatpush1.msra.mxu0 0.0
  %1554 = vmatprep.subr.mxu0 0.0
  %1555 = vmatpush1.msra.mxu0 0.0
  %1556 = vmatprep.subr.mxu0 0.0
  %1557 = vmatpush1.msra.mxu0 0.0
  %1558 = vmatprep.subr.mxu0 0.0
  %1559 = vmatpush1.msra.mxu0 0.0
  %1560 = vmatprep.subr.mxu0 0.0
  %1561 = vmatpush1.msra.mxu0 0.0
  %1562 = vmatprep.subr.mxu0 0.0
  %1563 = vmatpush1.msra.mxu0 0.0
  %1564 = vmatprep.subr.mxu0 0.0
  %1565 = vmatpush1.msra.mxu0 0.0
  %1566 = vmatprep.subr.mxu0 0.0
  %1567 = vmatpush1.msra.mxu0 0.0
  %1568 = vmatprep.subr.mxu0 0.0
  %1569 = vmatpush1.msra.mxu0 0.0
  %1570 = vmatprep.subr.mxu0 0.0
  %1571 = vmatpush1.msra.mxu0 0.0
  %1572 = vmatprep.subr.mxu0 0.0
  %1573 = vmatpush1.msra.mxu0 0.0
  %1574 = vmatprep.subr.mxu0 0.0
  %1575 = vmatpush1.msra.mxu0 0.0
  %1576 = vmatprep.subr.mxu0 0.0
  %1577 = vmatpush1.msra.mxu0 %v1010
  %1578 = vmatprep.subr.mxu0 0.0
  %1579 = vmatpush1.msra.mxu0 %v1009
  %1580 = vmatprep.subr.mxu0 0.0
  %1581 = vmatpush2.msra.mxu0 0.0
  %1582 = vmatprep.subr.mxu0 0.0
  %1583 = vmatpush2.msra.mxu0 0.0
  %1584 = vmatprep.subr.mxu0 0.0
  %1585 = vmatpush2.msra.mxu0 0.0
  %1586 = vmatprep.subr.mxu0 0.0
  %1587 = vmatpush2.msra.mxu0 0.0
  %1588 = vmatprep.subr.mxu0 0.0
  %1589 = vmatpush2.msra.mxu0 0.0
  %1590 = vmatprep.subr.mxu0 0.0
  %1591 = vmatpush2.msra.mxu0 0.0
  %1592 = vmatprep.subr.mxu0 0.0
  %1593 = vmatpush2.msra.mxu0 0.0
  %1594 = vmatprep.subr.mxu0 0.0
  %1595 = vmatpush2.msra.mxu0 0.0
  %1596 = vmatprep.subr.mxu0 0.0
  %1597 = vmatpush2.msra.mxu0 0.0
  %1598 = vmatprep.subr.mxu0 0.0
  %1599 = vmatpush2.msra.mxu0 0.0
  %1600 = vmatprep.subr.mxu0 0.0
  %1601 = vmatpush2.msra.mxu0 0.0
  %1602 = vmatprep.subr.mxu0 0.0
  %1603 = vmatpush2.msra.mxu0 0.0
  %1604 = vmatprep.subr.mxu0 0.0
  %1605 = vmatpush2.msra.mxu0 0.0
  %1606 = vmatprep.subr.mxu0 0.0
  %1607 = vmatpush2.msra.mxu0 0.0
  %1608 = vmatprep.subr.mxu0 0.0
  %1609 = vmatpush2.msra.mxu0 0.0
  %1610 = vmatprep.subr.mxu0 0.0
  %1611 = vmatpush2.msra.mxu0 0.0
  %1612 = vmatprep.mubr.f32.mxu0 0.0
  %1613 = vmatmul.mubr.f32.gmra.mxu0 %v1546
  %v1614 = vpop.f32.mrf.mxu0
  %v1615 = vadd.f32 %v1544, %v1614
  %v1616 = vpop.f32.mrf.mxu0
  %1617 = vdwg.mxu0
  %1618 = vst.msk [vmem:[%s1543] sm:$0xff] %vm1000, %v1615
  %1619 = vst.msk [vmem:[#allocation2] sm:$0xff] %vm1000, %v1615
  // Predicated region
  $region38: #{tpu_custom_call.1} parent=0 // pred_check
    _
  $region39: #{tpu_custom_call.1} parent=0 // pred_check_branch
    %1621 = sbr.rel (0) target = $region41
  $region40: #{tpu_custom_call.1} parent=0 // pred_region
    _
  $region41: #{tpu_custom_call.1} parent=0 // pred_fallthru
    _
  // Predicated region
  $region42: #{tpu_custom_call.1} parent=0 // pred_check
    _
  $region43: #{tpu_custom_call.1} parent=0 // pred_check_branch
    %1623 = sbr.rel (0) target = $region45
  $region44: #{tpu_custom_call.1} parent=0 // pred_region
    _
  $region45: #{tpu_custom_call.1} parent=0 // pred_fallthru
    _

</llo_original>
